<compile_context>
chip_gen: v7x
topology: tpu7x:2x2x1
jax: 0.10.0
libtpu: 0.0.40
codegen_flags: <defaults>
</compile_context>

<pallas_src>
import jax
import jax.numpy as jnp
from jax.experimental import pallas as pl
from jax.experimental.pallas import tpu as pltpu

IN_FEATURES = 512
OUT_FEATURES = 512

# 512 f32 rows of x/out = 1 MiB each; double-buffered -> ~4 MiB, plus the
# resident 0.5 MiB bf16 weight: fits every generation's scoped-VMEM default.
MAX_BATCH_TILE = 512


def linear_kernel(x_ref, w_ref, b_ref, o_ref):
    # x_ref: (tb, 512) f32   w_ref: (512, 512) bf16 (in x out)   b_ref: (1, 512) f32
    x = x_ref[...].astype(jnp.bfloat16)  # cheap in-VMEM cast (VPU)
    acc = jnp.dot(x, w_ref[...], preferred_element_type=jnp.float32)  # MXU, f32 acc
    o_ref[...] = (acc + b_ref[...]).astype(o_ref.dtype)


def prepare_stage2_params(weight, bias):
    """One-time param prep: (out,in) f32 -> (in,out) bf16 weight, 2-D f32 bias."""
    w_t = jnp.asarray(weight).T.astype(jnp.bfloat16)            # (512, 512), in x out
    b2d = jnp.asarray(bias, dtype=jnp.float32).reshape(1, -1)   # (1, 512)
    return w_t, b2d


def _build_call(B, K, N, tb, out_dtype, single_buffer_params):
    """Construct the pallas_call for a given batch tiling."""
    if single_buffer_params:
        # Weight/bias index_maps are constant across the grid: one buffer suffices.
        param_mode = dict(pipeline_mode=pl.Buffered(1))
    else:
        param_mode = {}

    return pl.pallas_call(
        linear_kernel,
        out_shape=jax.ShapeDtypeStruct((B, N), out_dtype),
        grid=(pl.cdiv(B, tb),),
        in_specs=[
            pl.BlockSpec((tb, K), lambda i: (i, 0)),               # x tile (pipelined)
            pl.BlockSpec((K, N), lambda i: (0, 0), **param_mode),  # resident bf16 weight
            pl.BlockSpec((1, N), lambda i: (0, 0), **param_mode),  # resident bias
        ],
        out_specs=pl.BlockSpec((tb, N), lambda i: (i, 0)),
        compiler_params=pltpu.CompilerParams(
            dimension_semantics=("parallel",),  # batch tiles shard across TCs (v7x)
        ),
    )


def stage2_forward(x, w_t_bf16, b2d, *, tb=None):
    """y = x @ W.T + b, with W pre-transposed + bf16-cast by prepare_stage2_params."""
    B, K = x.shape
    assert K == IN_FEATURES
    assert w_t_bf16.shape == (IN_FEATURES, OUT_FEATURES)
    N = OUT_FEATURES

    if tb is None:
        # Small batches: one tile (this regime is weight-DMA bound anyway).
        # Large batches: MXU/VMEM-friendly 512-row tiles (multiple of 8 sublanes).
        tb = B if B <= MAX_BATCH_TILE else MAX_BATCH_TILE

    try:
        return _build_call(B, K, N, tb, x.dtype, True)(x, w_t_bf16, b2d)
    except Exception:
        # Fallback if this jax version rejects pl.Buffered(1) on a BlockSpec:
        # identical semantics, default double-buffered params.
        return _build_call(B, K, N, tb, x.dtype, False)(x, w_t_bf16, b2d)


if __name__ == "__main__":
    key = jax.random.PRNGKey(0)
    kx, kw, kb = jax.random.split(key, 3)

    B = 8
    x = jax.random.normal(kx, (B, IN_FEATURES), dtype=jnp.float32)

    # nn.Linear-style uniform(-1/sqrt(fan_in), +1/sqrt(fan_in)) init.
    bound = 1.0 / (IN_FEATURES ** 0.5)
    weight = jax.random.uniform(
        kw, (OUT_FEATURES, IN_FEATURES), minval=-bound, maxval=bound, dtype=jnp.float32
    )
    bias = jax.random.uniform(
        kb, (OUT_FEATURES,), minval=-bound, maxval=bound, dtype=jnp.float32
    )

    # One-time parameter preparation (transpose + bf16 cast happen here, NOT per call).
    w_t_bf16, b2d = prepare_stage2_params(weight, bias)

    out = stage2_forward(x, w_t_bf16, b2d)
    out = jax.block_until_ready(out)

    # Reference check against plain-JAX f32 (bf16 weights -> slightly loose tolerance).
    ref = x @ weight.T + bias
    assert out.shape == (B, OUT_FEATURES)
    assert out.dtype == x.dtype
    max_err = float(jnp.max(jnp.abs(out - ref)))
    assert max_err < 3e-2, f"max abs error {max_err}"

    print("KERNEL_OK")
</pallas_src>

<mosaic_0001>
module attributes {stable_mosaic.version = 11 : i64} {
  func.func @linear_kernel(%arg0: i32, %arg1: memref<8x512xf32, #tpu.memory_space<vmem>>, %arg2: memref<512x512xbf16, #tpu.memory_space<vmem>>, %arg3: memref<1x512xf32, #tpu.memory_space<vmem>>, %arg4: memref<8x512xf32, #tpu.memory_space<vmem>>) attributes {dimension_semantics = [#tpu.dimension_semantics<parallel>], iteration_bounds = array<i64: 1>, scalar_prefetch = 0 : i64, scratch_operands = 0 : i64, tpu.core_type = #tpu.core_type<tc>, window_params = [{transform_indices = @transform_0, window_bounds = array<i64: 8, 512>}, {pipeline_mode = #tpu.pipeline_mode<synchronous>, transform_indices = @transform_1, window_bounds = array<i64: 512, 512>}, {pipeline_mode = #tpu.pipeline_mode<synchronous>, transform_indices = @transform_2, window_bounds = array<i64: 1, 512>}, {transform_indices = @transform_3, window_bounds = array<i64: 8, 512>}]} {
    %c0 = arith.constant 0 : index
    %c0_0 = arith.constant 0 : index
    %0 = vector.load %arg1[%c0, %c0_0] : memref<8x512xf32, #tpu.memory_space<vmem>>, vector<8x512xf32>
    %1 = arith.truncf %0 : vector<8x512xf32> to vector<8x512xbf16>
    %c0_1 = arith.constant 0 : index
    %c0_2 = arith.constant 0 : index
    %2 = vector.load %arg2[%c0_1, %c0_2] : memref<512x512xbf16, #tpu.memory_space<vmem>>, vector<512x512xbf16>
    %cst = arith.constant dense<0.000000e+00> : vector<8x512xf32>
    %3 = tpu.matmul %1, %2, %cst {dimension_numbers = #tpu.dot_dimension_numbers<[1], [0], [0], [1], [0, 0, 1, 1], [], []>} : vector<8x512xbf16>, vector<512x512xbf16>, vector<8x512xf32> -> vector<8x512xf32>
    %c0_3 = arith.constant 0 : index
    %c0_4 = arith.constant 0 : index
    %4 = vector.load %arg3[%c0_3, %c0_4] : memref<1x512xf32, #tpu.memory_space<vmem>>, vector<1x512xf32>
    %5 = vector.broadcast %4 : vector<1x512xf32> to vector<8x512xf32>
    %6 = arith.addf %3, %5 : vector<8x512xf32>
    %c0_5 = arith.constant 0 : index
    %c0_6 = arith.constant 0 : index
    %7 = vector.load %arg4[%c0_5, %c0_6] : memref<8x512xf32, #tpu.memory_space<vmem>>, vector<8x512xf32>
    tpu.vector_store %arg4[%c0_5, %c0_6], %6 {strides = array<i32>} : memref<8x512xf32, #tpu.memory_space<vmem>>, vector<8x512xf32>,
    return
  }
  func.func @transform_0(%arg0: i32) -> (i32, i32) {
    %c0_i32 = arith.constant 0 : i32
    %c0_i32_0 = arith.constant 0 : i32
    return %arg0, %c0_i32 : i32, i32
  }
  func.func @transform_1(%arg0: i32) -> (i32, i32) {
    %c0_i32 = arith.constant 0 : i32
    %c0_i32_0 = arith.constant 0 : i32
    %c0_i32_1 = arith.constant 0 : i32
    return %c0_i32, %c0_i32_0 : i32, i32
  }
  func.func @transform_2(%arg0: i32) -> (i32, i32) {
    %c0_i32 = arith.constant 0 : i32
    %c0_i32_0 = arith.constant 0 : i32
    %c0_i32_1 = arith.constant 0 : i32
    return %c0_i32, %c0_i32_0 : i32, i32
  }
  func.func @transform_3(%arg0: i32) -> (i32, i32) {
    %c0_i32 = arith.constant 0 : i32
    %c0_i32_0 = arith.constant 0 : i32
    return %arg0, %c0_i32 : i32, i32
  }
}

module attributes {stable_mosaic.version = 11 : i64} {
  func.func @linear_kernel(%arg0: i32, %arg1: memref<8x512xf32, #tpu.memory_space<vmem>>, %arg2: memref<512x512xbf16, #tpu.memory_space<vmem>>, %arg3: memref<1x512xf32, #tpu.memory_space<vmem>>, %arg4: memref<8x512xf32, #tpu.memory_space<vmem>>) attributes {dimension_semantics = [#tpu.dimension_semantics<parallel>], iteration_bounds = array<i64: 1>, scalar_prefetch = 0 : i64, scratch_operands = 0 : i64, tpu.core_type = #tpu.core_type<tc>, window_params = [{transform_indices = @transform_0, window_bounds = array<i64: 8, 512>}, {pipeline_mode = #tpu.pipeline_mode<synchronous>, transform_indices = @transform_1, window_bounds = array<i64: 512, 512>}, {pipeline_mode = #tpu.pipeline_mode<synchronous>, transform_indices = @transform_2, window_bounds = array<i64: 1, 512>}, {transform_indices = @transform_3, window_bounds = array<i64: 8, 512>}]} {
    %c0 = arith.constant 0 : index
    %c0_0 = arith.constant 0 : index
    %0 = vector.load %arg1[%c0, %c0_0] : memref<8x512xf32, #tpu.memory_space<vmem>>, vector<8x512xf32>
    %1 = arith.truncf %0 : vector<8x512xf32> to vector<8x512xbf16>
    %c0_1 = arith.constant 0 : index
    %c0_2 = arith.constant 0 : index
    %2 = vector.load %arg2[%c0_1, %c0_2] : memref<512x512xbf16, #tpu.memory_space<vmem>>, vector<512x512xbf16>
    %cst = arith.constant dense<0.000000e+00> : vector<8x512xf32>
    %3 = tpu.matmul %1, %2, %cst {dimension_numbers = #tpu.dot_dimension_numbers<[1], [0], [0], [1], [0, 0, 1, 1], [], []>} : vector<8x512xbf16>, vector<512x512xbf16>, vector<8x512xf32> -> vector<8x512xf32>
    %c0_3 = arith.constant 0 : index
    %c0_4 = arith.constant 0 : index
    %4 = vector.load %arg3[%c0_3, %c0_4] : memref<1x512xf32, #tpu.memory_space<vmem>>, vector<1x512xf32>
    %5 = vector.broadcast %4 : vector<1x512xf32> to vector<8x512xf32>
    %6 = arith.addf %3, %5 : vector<8x512xf32>
    %c0_5 = arith.constant 0 : index
    %c0_6 = arith.constant 0 : index
    %7 = vector.load %arg4[%c0_5, %c0_6] : memref<8x512xf32, #tpu.memory_space<vmem>>, vector<8x512xf32>
    tpu.vector_store %arg4[%c0_5, %c0_6], %6 {strides = array<i32>} : memref<8x512xf32, #tpu.memory_space<vmem>>, vector<8x512xf32>,
    return
  }
  func.func @transform_0(%arg0: i32) -> (i32, i32) {
    %c0_i32 = arith.constant 0 : i32
    %c0_i32_0 = arith.constant 0 : i32
    return %arg0, %c0_i32 : i32, i32
  }
  func.func @transform_1(%arg0: i32) -> (i32, i32) {
    %c0_i32 = arith.constant 0 : i32
    %c0_i32_0 = arith.constant 0 : i32
    %c0_i32_1 = arith.constant 0 : i32
    return %c0_i32, %c0_i32_0 : i32, i32
  }
  func.func @transform_2(%arg0: i32) -> (i32, i32) {
    %c0_i32 = arith.constant 0 : i32
    %c0_i32_0 = arith.constant 0 : i32
    %c0_i32_1 = arith.constant 0 : i32
    return %c0_i32, %c0_i32_0 : i32, i32
  }
  func.func @transform_3(%arg0: i32) -> (i32, i32) {
    %c0_i32 = arith.constant 0 : i32
    %c0_i32_0 = arith.constant 0 : i32
    return %arg0, %c0_i32 : i32, i32
  }
}

</mosaic_0001>

<llo_original>
// kernel: tpu_custom_call.1
$region0: #{tpu_custom_call.1}
  #allocation0 [shape = 'u32[]', space=smem, size = 0x4, offset = 0x4, fixed_abs, tag = 'smem constant byte address 0x4 - core index']
  #allocation1 [shape = 'u32[144,128]{1,0:T(1,128)}', space=vmem, size = 0x12000, scoped, tag = 'internal scratch']
  %s0 = inlined_call_operand.hbm [shape: f32[8,512], index: 0, kind: input, shape index: {}]
  %s1 = inlined_call_operand.hbm [shape: bf16[512,512], index: 1, kind: input, shape index: {}]
  %s2 = inlined_call_operand.vmem [shape: f32[1,512], index: 2, kind: input, shape index: {}]
  %s3 = inlined_call_operand.hbm [shape: f32[8,512], index: 3, kind: output, shape index: {}]
  %s4 = sld [smem:[#allocation0]]
  $region30: #{tpu_custom_call.1} parent=0
    _
  %s6 = ssub.s32 1, %s4
  %s7 = scalar_select 0, %s6, %s4
  $region1: #{tpu_custom_call.1} parent=0
    #allocation2 [shape = 'u8[16384]{0}', space=vmem, size = 0x4000, scoped, tag = 'input window, operand 0, single buffered']
    #allocation3 [shape = 's32[1]{0}', space=sflag, size = 0x4, scoped, tag = 'scoped memory for tpu_custom_call.1']
    #allocation4 [shape = 's32[1]{0}', space=sflag, size = 0x4, scoped, tag = 'scoped memory for tpu_custom_call.1']
    #allocation5 [shape = 'u8[524288]{0}', space=vmem, size = 0x80000, scoped, tag = 'input window, operand 1, single buffered']
    #allocation6 [shape = 's32[1]{0}', space=sflag, size = 0x4, scoped, tag = 'scoped memory for tpu_custom_call.1']
    #allocation7 [shape = 'u8[16384]{0}', space=vmem, size = 0x4000, scoped, tag = 'output window, operand 0, single buffered']
    %8 = vsyncpa [#allocation3], 0
    %9 = vsyncpa [#allocation6], 0
    %10 = vsyncpa [#allocation4], 0
    // Predicated region
    $region2: #{tpu_custom_call.1} parent=1 // pred_check
      _
    $region3: #{tpu_custom_call.1} parent=1 // pred_check_branch
      %12 = sbr.rel (0) target = $region5
    $region4: #{tpu_custom_call.1} parent=1 // pred_region
      %s14 = ssub.s32 512, 512
      %15 = vsyncadd [#allocation3], %s14
      %s17 = sshll.u32 [#allocation2], 4
      %s18 = int_to_ptr.vmem [resolvable:$true] %s17
      %20 = dma.hbm_to_vmem [thread:$0]  %s0, 512, %s18, [#allocation3]
    $region5: #{tpu_custom_call.1} parent=1 // pred_fallthru
      _
    // Predicated region
    $region6: #{tpu_custom_call.1} parent=1 // pred_check
      _
    $region7: #{tpu_custom_call.1} parent=1 // pred_check_branch
      %22 = sbr.rel (0) target = $region9
    $region8: #{tpu_custom_call.1} parent=1 // pred_region
      %s24 = ssub.s32 16384, 16384
      %25 = vsyncadd [#allocation6], %s24
      %s26 = sshll.u32 [#allocation5], 4
      %s27 = int_to_ptr.vmem [resolvable:$true] %s26
      %32 = dma.hbm_to_vmem [thread:$0]  %s1, 16384, %s27, [#allocation6], 256, 256, 16
    $region9: #{tpu_custom_call.1} parent=1 // pred_fallthru
      _
    // Predicated region
    $region10: #{tpu_custom_call.1} parent=1 // pred_check
      _
    $region11: #{tpu_custom_call.1} parent=1 // pred_check_branch
      %34 = sbr.rel (0) target = $region13
    $region12: #{tpu_custom_call.1} parent=1 // pred_region
      _
    $region13: #{tpu_custom_call.1} parent=1 // pred_fallthru
      _
    // Predicated region
    $region14: #{tpu_custom_call.1} parent=1 // pred_check
      _
    $region15: #{tpu_custom_call.1} parent=1 // pred_check_branch
      %36 = sbr.rel (0) target = $region17
    $region16: #{tpu_custom_call.1} parent=1 // pred_region
      %37 = dma.done [#allocation3], 512
    $region17: #{tpu_custom_call.1} parent=1 // pred_fallthru
      _
    // Predicated region
    $region18: #{tpu_custom_call.1} parent=1 // pred_check
      _
    $region19: #{tpu_custom_call.1} parent=1 // pred_check_branch
      %39 = sbr.rel (0) target = $region21
    $region20: #{tpu_custom_call.1} parent=1 // pred_region
      %40 = dma.done [#allocation6], 16384
    $region21: #{tpu_custom_call.1} parent=1 // pred_fallthru
      _
    %v41 = vld [vmem:[#allocation2] sm:$0xff]
    %v42 = vld [vmem:[#allocation2 + $0x8] sm:$0xff]
    %v43 = vld [vmem:[#allocation2 + $0x10] sm:$0xff]
    %v44 = vld [vmem:[#allocation2 + $0x18] sm:$0xff]
    %v45 = vpack.c.bf16 %v41, %v41
    %v46 = vpack.c.bf16 %v42, %v42
    %v47 = vpack.c.bf16 %v43, %v43
    %v48 = vpack.c.bf16 %v44, %v44
    %v49 = vld [vmem:[#allocation5] sm:$0xff]
    %v50 = vld [vmem:[#allocation5 + $0x8] sm:$0xff]
    %v51 = vld [vmem:[#allocation5 + $0x10] sm:$0xff]
    %v52 = vld [vmem:[#allocation5 + $0x18] sm:$0xff]
    %v53 = vld [vmem:[#allocation5 + $0x20] sm:$0xff]
    %v54 = vld [vmem:[#allocation5 + $0x28] sm:$0xff]
    %v55 = vld [vmem:[#allocation5 + $0x30] sm:$0xff]
    %v56 = vld [vmem:[#allocation5 + $0x38] sm:$0xff]
    %v57 = vld [vmem:[#allocation5 + $0x40] sm:$0xff]
    %v58 = vld [vmem:[#allocation5 + $0x48] sm:$0xff]
    %v59 = vld [vmem:[#allocation5 + $0x50] sm:$0xff]
    %v60 = vld [vmem:[#allocation5 + $0x58] sm:$0xff]
    %v61 = vld [vmem:[#allocation5 + $0x60] sm:$0xff]
    %v62 = vld [vmem:[#allocation5 + $0x68] sm:$0xff]
    %v63 = vld [vmem:[#allocation5 + $0x70] sm:$0xff]
    %v64 = vld [vmem:[#allocation5 + $0x78] sm:$0xff]
    %v65 = vld [vmem:[#allocation5 + $0x80] sm:$0xff]
    %v66 = vld [vmem:[#allocation5 + $0x88] sm:$0xff]
    %v67 = vld [vmem:[#allocation5 + $0x90] sm:$0xff]
    %v68 = vld [vmem:[#allocation5 + $0x98] sm:$0xff]
    %v69 = vld [vmem:[#allocation5 + $0xa0] sm:$0xff]
    %v70 = vld [vmem:[#allocation5 + $0xa8] sm:$0xff]
    %v71 = vld [vmem:[#allocation5 + $0xb0] sm:$0xff]
    %v72 = vld [vmem:[#allocation5 + $0xb8] sm:$0xff]
    %v73 = vld [vmem:[#allocation5 + $0xc0] sm:$0xff]
    %v74 = vld [vmem:[#allocation5 + $0xc8] sm:$0xff]
    %v75 = vld [vmem:[#allocation5 + $0xd0] sm:$0xff]
    %v76 = vld [vmem:[#allocation5 + $0xd8] sm:$0xff]
    %v77 = vld [vmem:[#allocation5 + $0xe0] sm:$0xff]
    %v78 = vld [vmem:[#allocation5 + $0xe8] sm:$0xff]
    %v79 = vld [vmem:[#allocation5 + $0xf0] sm:$0xff]
    %v80 = vld [vmem:[#allocation5 + $0xf8] sm:$0xff]
    %v81 = vld [vmem:[#allocation5 + $0x100] sm:$0xff]
    %v82 = vld [vmem:[#allocation5 + $0x108] sm:$0xff]
    %v83 = vld [vmem:[#allocation5 + $0x110] sm:$0xff]
    %v84 = vld [vmem:[#allocation5 + $0x118] sm:$0xff]
    %v85 = vld [vmem:[#allocation5 + $0x120] sm:$0xff]
    %v86 = vld [vmem:[#allocation5 + $0x128] sm:$0xff]
    %v87 = vld [vmem:[#allocation5 + $0x130] sm:$0xff]
    %v88 = vld [vmem:[#allocation5 + $0x138] sm:$0xff]
    %v89 = vld [vmem:[#allocation5 + $0x140] sm:$0xff]
    %v90 = vld [vmem:[#allocation5 + $0x148] sm:$0xff]
    %v91 = vld [vmem:[#allocation5 + $0x150] sm:$0xff]
    %v92 = vld [vmem:[#allocation5 + $0x158] sm:$0xff]
    %v93 = vld [vmem:[#allocation5 + $0x160] sm:$0xff]
    %v94 = vld [vmem:[#allocation5 + $0x168] sm:$0xff]
    %v95 = vld [vmem:[#allocation5 + $0x170] sm:$0xff]
    %v96 = vld [vmem:[#allocation5 + $0x178] sm:$0xff]
    %v97 = vld [vmem:[#allocation5 + $0x180] sm:$0xff]
    %v98 = vld [vmem:[#allocation5 + $0x188] sm:$0xff]
    %v99 = vld [vmem:[#allocation5 + $0x190] sm:$0xff]
    %v100 = vld [vmem:[#allocation5 + $0x198] sm:$0xff]
    %v101 = vld [vmem:[#allocation5 + $0x1a0] sm:$0xff]
    %v102 = vld [vmem:[#allocation5 + $0x1a8] sm:$0xff]
    %v103 = vld [vmem:[#allocation5 + $0x1b0] sm:$0xff]
    %v104 = vld [vmem:[#allocation5 + $0x1b8] sm:$0xff]
    %v105 = vld [vmem:[#allocation5 + $0x1c0] sm:$0xff]
    %v106 = vld [vmem:[#allocation5 + $0x1c8] sm:$0xff]
    %v107 = vld [vmem:[#allocation5 + $0x1d0] sm:$0xff]
    %v108 = vld [vmem:[#allocation5 + $0x1d8] sm:$0xff]
    %v109 = vld [vmem:[#allocation5 + $0x1e0] sm:$0xff]
    %v110 = vld [vmem:[#allocation5 + $0x1e8] sm:$0xff]
    %v111 = vld [vmem:[#allocation5 + $0x1f0] sm:$0xff]
    %v112 = vld [vmem:[#allocation5 + $0x1f8] sm:$0xff]
    %v113 = vld [vmem:[#allocation5 + $0x200] sm:$0xff]
    %v114 = vld [vmem:[#allocation5 + $0x208] sm:$0xff]
    %v115 = vld [vmem:[#allocation5 + $0x210] sm:$0xff]
    %v116 = vld [vmem:[#allocation5 + $0x218] sm:$0xff]
    %v117 = vld [vmem:[#allocation5 + $0x220] sm:$0xff]
    %v118 = vld [vmem:[#allocation5 + $0x228] sm:$0xff]
    %v119 = vld [vmem:[#allocation5 + $0x230] sm:$0xff]
    %v120 = vld [vmem:[#allocation5 + $0x238] sm:$0xff]
    %v121 = vld [vmem:[#allocation5 + $0x240] sm:$0xff]
    %v122 = vld [vmem:[#allocation5 + $0x248] sm:$0xff]
    %v123 = vld [vmem:[#allocation5 + $0x250] sm:$0xff]
    %v124 = vld [vmem:[#allocation5 + $0x258] sm:$0xff]
    %v125 = vld [vmem:[#allocation5 + $0x260] sm:$0xff]
    %v126 = vld [vmem:[#allocation5 + $0x268] sm:$0xff]
    %v127 = vld [vmem:[#allocation5 + $0x270] sm:$0xff]
    %v128 = vld [vmem:[#allocation5 + $0x278] sm:$0xff]
    %v129 = vld [vmem:[#allocation5 + $0x280] sm:$0xff]
    %v130 = vld [vmem:[#allocation5 + $0x288] sm:$0xff]
    %v131 = vld [vmem:[#allocation5 + $0x290] sm:$0xff]
    %v132 = vld [vmem:[#allocation5 + $0x298] sm:$0xff]
    %v133 = vld [vmem:[#allocation5 + $0x2a0] sm:$0xff]
    %v134 = vld [vmem:[#allocation5 + $0x2a8] sm:$0xff]
    %v135 = vld [vmem:[#allocation5 + $0x2b0] sm:$0xff]
    %v136 = vld [vmem:[#allocation5 + $0x2b8] sm:$0xff]
    %v137 = vld [vmem:[#allocation5 + $0x2c0] sm:$0xff]
    %v138 = vld [vmem:[#allocation5 + $0x2c8] sm:$0xff]
    %v139 = vld [vmem:[#allocation5 + $0x2d0] sm:$0xff]
    %v140 = vld [vmem:[#allocation5 + $0x2d8] sm:$0xff]
    %v141 = vld [vmem:[#allocation5 + $0x2e0] sm:$0xff]
    %v142 = vld [vmem:[#allocation5 + $0x2e8] sm:$0xff]
    %v143 = vld [vmem:[#allocation5 + $0x2f0] sm:$0xff]
    %v144 = vld [vmem:[#allocation5 + $0x2f8] sm:$0xff]
    %v145 = vld [vmem:[#allocation5 + $0x300] sm:$0xff]
    %v146 = vld [vmem:[#allocation5 + $0x308] sm:$0xff]
    %v147 = vld [vmem:[#allocation5 + $0x310] sm:$0xff]
    %v148 = vld [vmem:[#allocation5 + $0x318] sm:$0xff]
    %v149 = vld [vmem:[#allocation5 + $0x320] sm:$0xff]
    %v150 = vld [vmem:[#allocation5 + $0x328] sm:$0xff]
    %v151 = vld [vmem:[#allocation5 + $0x330] sm:$0xff]
    %v152 = vld [vmem:[#allocation5 + $0x338] sm:$0xff]
    %v153 = vld [vmem:[#allocation5 + $0x340] sm:$0xff]
    %v154 = vld [vmem:[#allocation5 + $0x348] sm:$0xff]
    %v155 = vld [vmem:[#allocation5 + $0x350] sm:$0xff]
    %v156 = vld [vmem:[#allocation5 + $0x358] sm:$0xff]
    %v157 = vld [vmem:[#allocation5 + $0x360] sm:$0xff]
    %v158 = vld [vmem:[#allocation5 + $0x368] sm:$0xff]
    %v159 = vld [vmem:[#allocation5 + $0x370] sm:$0xff]
    %v160 = vld [vmem:[#allocation5 + $0x378] sm:$0xff]
    %v161 = vld [vmem:[#allocation5 + $0x380] sm:$0xff]
    %v162 = vld [vmem:[#allocation5 + $0x388] sm:$0xff]
    %v163 = vld [vmem:[#allocation5 + $0x390] sm:$0xff]
    %v164 = vld [vmem:[#allocation5 + $0x398] sm:$0xff]
    %v165 = vld [vmem:[#allocation5 + $0x3a0] sm:$0xff]
    %v166 = vld [vmem:[#allocation5 + $0x3a8] sm:$0xff]
    %v167 = vld [vmem:[#allocation5 + $0x3b0] sm:$0xff]
    %v168 = vld [vmem:[#allocation5 + $0x3b8] sm:$0xff]
    %v169 = vld [vmem:[#allocation5 + $0x3c0] sm:$0xff]
    %v170 = vld [vmem:[#allocation5 + $0x3c8] sm:$0xff]
    %v171 = vld [vmem:[#allocation5 + $0x3d0] sm:$0xff]
    %v172 = vld [vmem:[#allocation5 + $0x3d8] sm:$0xff]
    %v173 = vld [vmem:[#allocation5 + $0x3e0] sm:$0xff]
    %v174 = vld [vmem:[#allocation5 + $0x3e8] sm:$0xff]
    %v175 = vld [vmem:[#allocation5 + $0x3f0] sm:$0xff]
    %v176 = vld [vmem:[#allocation5 + $0x3f8] sm:$0xff]
    %v177 = vld [vmem:[%s2] sm:$0xf]
    %v179 = vlaneseq
    %v180 = vshrl.u32 %v179, 7
    %v181 = vsub.s32 0, %v180
    %v182 = vrot.slane %v177, %v181
    %v183 = vlaneseq
    %v184 = vshrl.u32 %v183, 7
    %v185 = vsub.s32 1, %v184
    %v186 = vrot.slane %v177, %v185
    %v187 = vlaneseq
    %v188 = vshrl.u32 %v187, 7
    %v189 = vsub.s32 2, %v188
    %v190 = vrot.slane %v177, %v189
    %v191 = vlaneseq
    %v192 = vshrl.u32 %v191, 7
    %v193 = vsub.s32 3, %v192
    %v194 = vrot.slane %v177, %v193
    %v327 = vunpack.c.l.b16 %v49
    %v328 = vunpack.c.h.b16 %v49
    %v329 = vunpack.c.l.b16 %v50
    %v330 = vunpack.c.h.b16 %v50
    %v331 = vunpack.c.l.b16 %v51
    %v332 = vunpack.c.h.b16 %v51
    %v333 = vunpack.c.l.b16 %v52
    %v334 = vunpack.c.h.b16 %v52
    %v335 = vunpack.c.l.b16 %v53
    %v336 = vunpack.c.h.b16 %v53
    %v337 = vunpack.c.l.b16 %v54
    %v338 = vunpack.c.h.b16 %v54
    %v339 = vunpack.c.l.b16 %v55
    %v340 = vunpack.c.h.b16 %v55
    %v341 = vunpack.c.l.b16 %v56
    %v342 = vunpack.c.h.b16 %v56
    %v343 = vunpack.c.l.b16 %v57
    %v344 = vunpack.c.h.b16 %v57
    %v345 = vunpack.c.l.b16 %v58
    %v346 = vunpack.c.h.b16 %v58
    %v347 = vunpack.c.l.b16 %v59
    %v348 = vunpack.c.h.b16 %v59
    %v349 = vunpack.c.l.b16 %v60
    %v350 = vunpack.c.h.b16 %v60
    %v351 = vunpack.c.l.b16 %v61
    %v352 = vunpack.c.h.b16 %v61
    %v353 = vunpack.c.l.b16 %v62
    %v354 = vunpack.c.h.b16 %v62
    %v355 = vunpack.c.l.b16 %v63
    %v356 = vunpack.c.h.b16 %v63
    %v357 = vunpack.c.l.b16 %v64
    %v358 = vunpack.c.h.b16 %v64
    %v359 = vunpack.c.l.b16 %v65
    %v360 = vunpack.c.h.b16 %v65
    %v361 = vunpack.c.l.b16 %v66
    %v362 = vunpack.c.h.b16 %v66
    %v363 = vunpack.c.l.b16 %v67
    %v364 = vunpack.c.h.b16 %v67
    %v365 = vunpack.c.l.b16 %v68
    %v366 = vunpack.c.h.b16 %v68
    %v367 = vunpack.c.l.b16 %v69
    %v368 = vunpack.c.h.b16 %v69
    %v369 = vunpack.c.l.b16 %v70
    %v370 = vunpack.c.h.b16 %v70
    %v371 = vunpack.c.l.b16 %v71
    %v372 = vunpack.c.h.b16 %v71
    %v373 = vunpack.c.l.b16 %v72
    %v374 = vunpack.c.h.b16 %v72
    %v375 = vunpack.c.l.b16 %v73
    %v376 = vunpack.c.h.b16 %v73
    %v377 = vunpack.c.l.b16 %v74
    %v378 = vunpack.c.h.b16 %v74
    %v379 = vunpack.c.l.b16 %v75
    %v380 = vunpack.c.h.b16 %v75
    %v381 = vunpack.c.l.b16 %v76
    %v382 = vunpack.c.h.b16 %v76
    %v383 = vunpack.c.l.b16 %v77
    %v384 = vunpack.c.h.b16 %v77
    %v385 = vunpack.c.l.b16 %v78
    %v386 = vunpack.c.h.b16 %v78
    %v387 = vunpack.c.l.b16 %v79
    %v388 = vunpack.c.h.b16 %v79
    %v389 = vunpack.c.l.b16 %v80
    %v390 = vunpack.c.h.b16 %v80
    %v391 = vunpack.c.l.b16 %v81
    %v392 = vunpack.c.h.b16 %v81
    %v393 = vunpack.c.l.b16 %v82
    %v394 = vunpack.c.h.b16 %v82
    %v395 = vunpack.c.l.b16 %v83
    %v396 = vunpack.c.h.b16 %v83
    %v397 = vunpack.c.l.b16 %v84
    %v398 = vunpack.c.h.b16 %v84
    %v399 = vunpack.c.l.b16 %v85
    %v400 = vunpack.c.h.b16 %v85
    %v401 = vunpack.c.l.b16 %v86
    %v402 = vunpack.c.h.b16 %v86
    %v403 = vunpack.c.l.b16 %v87
    %v404 = vunpack.c.h.b16 %v87
    %v405 = vunpack.c.l.b16 %v88
    %v406 = vunpack.c.h.b16 %v88
    %v407 = vunpack.c.l.b16 %v89
    %v408 = vunpack.c.h.b16 %v89
    %v409 = vunpack.c.l.b16 %v90
    %v410 = vunpack.c.h.b16 %v90
    %v411 = vunpack.c.l.b16 %v91
    %v412 = vunpack.c.h.b16 %v91
    %v413 = vunpack.c.l.b16 %v92
    %v414 = vunpack.c.h.b16 %v92
    %v415 = vunpack.c.l.b16 %v93
    %v416 = vunpack.c.h.b16 %v93
    %v417 = vunpack.c.l.b16 %v94
    %v418 = vunpack.c.h.b16 %v94
    %v419 = vunpack.c.l.b16 %v95
    %v420 = vunpack.c.h.b16 %v95
    %v421 = vunpack.c.l.b16 %v96
    %v422 = vunpack.c.h.b16 %v96
    %v423 = vunpack.c.l.b16 %v97
    %v424 = vunpack.c.h.b16 %v97
    %v425 = vunpack.c.l.b16 %v98
    %v426 = vunpack.c.h.b16 %v98
    %v427 = vunpack.c.l.b16 %v99
    %v428 = vunpack.c.h.b16 %v99
    %v429 = vunpack.c.l.b16 %v100
    %v430 = vunpack.c.h.b16 %v100
    %v431 = vunpack.c.l.b16 %v101
    %v432 = vunpack.c.h.b16 %v101
    %v433 = vunpack.c.l.b16 %v102
    %v434 = vunpack.c.h.b16 %v102
    %v435 = vunpack.c.l.b16 %v103
    %v436 = vunpack.c.h.b16 %v103
    %v437 = vunpack.c.l.b16 %v104
    %v438 = vunpack.c.h.b16 %v104
    %v439 = vunpack.c.l.b16 %v105
    %v440 = vunpack.c.h.b16 %v105
    %v441 = vunpack.c.l.b16 %v106
    %v442 = vunpack.c.h.b16 %v106
    %v443 = vunpack.c.l.b16 %v107
    %v444 = vunpack.c.h.b16 %v107
    %v445 = vunpack.c.l.b16 %v108
    %v446 = vunpack.c.h.b16 %v108
    %v447 = vunpack.c.l.b16 %v109
    %v448 = vunpack.c.h.b16 %v109
    %v449 = vunpack.c.l.b16 %v110
    %v450 = vunpack.c.h.b16 %v110
    %v451 = vunpack.c.l.b16 %v111
    %v452 = vunpack.c.h.b16 %v111
    %v453 = vunpack.c.l.b16 %v112
    %v454 = vunpack.c.h.b16 %v112
    %v455 = vunpack.c.l.b16 %v113
    %v456 = vunpack.c.h.b16 %v113
    %v457 = vunpack.c.l.b16 %v114
    %v458 = vunpack.c.h.b16 %v114
    %v459 = vunpack.c.l.b16 %v115
    %v460 = vunpack.c.h.b16 %v115
    %v461 = vunpack.c.l.b16 %v116
    %v462 = vunpack.c.h.b16 %v116
    %v463 = vunpack.c.l.b16 %v117
    %v464 = vunpack.c.h.b16 %v117
    %v465 = vunpack.c.l.b16 %v118
    %v466 = vunpack.c.h.b16 %v118
    %v467 = vunpack.c.l.b16 %v119
    %v468 = vunpack.c.h.b16 %v119
    %v469 = vunpack.c.l.b16 %v120
    %v470 = vunpack.c.h.b16 %v120
    %v471 = vunpack.c.l.b16 %v121
    %v472 = vunpack.c.h.b16 %v121
    %v473 = vunpack.c.l.b16 %v122
    %v474 = vunpack.c.h.b16 %v122
    %v475 = vunpack.c.l.b16 %v123
    %v476 = vunpack.c.h.b16 %v123
    %v477 = vunpack.c.l.b16 %v124
    %v478 = vunpack.c.h.b16 %v124
    %v479 = vunpack.c.l.b16 %v125
    %v480 = vunpack.c.h.b16 %v125
    %v481 = vunpack.c.l.b16 %v126
    %v482 = vunpack.c.h.b16 %v126
    %v483 = vunpack.c.l.b16 %v127
    %v484 = vunpack.c.h.b16 %v127
    %v485 = vunpack.c.l.b16 %v128
    %v486 = vunpack.c.h.b16 %v128
    %v487 = vunpack.c.l.b16 %v129
    %v488 = vunpack.c.h.b16 %v129
    %v489 = vunpack.c.l.b16 %v130
    %v490 = vunpack.c.h.b16 %v130
    %v491 = vunpack.c.l.b16 %v131
    %v492 = vunpack.c.h.b16 %v131
    %v493 = vunpack.c.l.b16 %v132
    %v494 = vunpack.c.h.b16 %v132
    %v495 = vunpack.c.l.b16 %v133
    %v496 = vunpack.c.h.b16 %v133
    %v497 = vunpack.c.l.b16 %v134
    %v498 = vunpack.c.h.b16 %v134
    %v499 = vunpack.c.l.b16 %v135
    %v500 = vunpack.c.h.b16 %v135
    %v501 = vunpack.c.l.b16 %v136
    %v502 = vunpack.c.h.b16 %v136
    %v503 = vunpack.c.l.b16 %v137
    %v504 = vunpack.c.h.b16 %v137
    %v505 = vunpack.c.l.b16 %v138
    %v506 = vunpack.c.h.b16 %v138
    %v507 = vunpack.c.l.b16 %v139
    %v508 = vunpack.c.h.b16 %v139
    %v509 = vunpack.c.l.b16 %v140
    %v510 = vunpack.c.h.b16 %v140
    %v511 = vunpack.c.l.b16 %v141
    %v512 = vunpack.c.h.b16 %v141
    %v513 = vunpack.c.l.b16 %v142
    %v514 = vunpack.c.h.b16 %v142
    %v515 = vunpack.c.l.b16 %v143
    %v516 = vunpack.c.h.b16 %v143
    %v517 = vunpack.c.l.b16 %v144
    %v518 = vunpack.c.h.b16 %v144
    %v519 = vunpack.c.l.b16 %v145
    %v520 = vunpack.c.h.b16 %v145
    %v521 = vunpack.c.l.b16 %v146
    %v522 = vunpack.c.h.b16 %v146
    %v523 = vunpack.c.l.b16 %v147
    %v524 = vunpack.c.h.b16 %v147
    %v525 = vunpack.c.l.b16 %v148
    %v526 = vunpack.c.h.b16 %v148
    %v527 = vunpack.c.l.b16 %v149
    %v528 = vunpack.c.h.b16 %v149
    %v529 = vunpack.c.l.b16 %v150
    %v530 = vunpack.c.h.b16 %v150
    %v531 = vunpack.c.l.b16 %v151
    %v532 = vunpack.c.h.b16 %v151
    %v533 = vunpack.c.l.b16 %v152
    %v534 = vunpack.c.h.b16 %v152
    %v535 = vunpack.c.l.b16 %v153
    %v536 = vunpack.c.h.b16 %v153
    %v537 = vunpack.c.l.b16 %v154
    %v538 = vunpack.c.h.b16 %v154
    %v539 = vunpack.c.l.b16 %v155
    %v540 = vunpack.c.h.b16 %v155
    %v541 = vunpack.c.l.b16 %v156
    %v542 = vunpack.c.h.b16 %v156
    %v543 = vunpack.c.l.b16 %v157
    %v544 = vunpack.c.h.b16 %v157
    %v545 = vunpack.c.l.b16 %v158
    %v546 = vunpack.c.h.b16 %v158
    %v547 = vunpack.c.l.b16 %v159
    %v548 = vunpack.c.h.b16 %v159
    %v549 = vunpack.c.l.b16 %v160
    %v550 = vunpack.c.h.b16 %v160
    %v551 = vunpack.c.l.b16 %v161
    %v552 = vunpack.c.h.b16 %v161
    %v553 = vunpack.c.l.b16 %v162
    %v554 = vunpack.c.h.b16 %v162
    %v555 = vunpack.c.l.b16 %v163
    %v556 = vunpack.c.h.b16 %v163
    %v557 = vunpack.c.l.b16 %v164
    %v558 = vunpack.c.h.b16 %v164
    %v559 = vunpack.c.l.b16 %v165
    %v560 = vunpack.c.h.b16 %v165
    %v561 = vunpack.c.l.b16 %v166
    %v562 = vunpack.c.h.b16 %v166
    %v563 = vunpack.c.l.b16 %v167
    %v564 = vunpack.c.h.b16 %v167
    %v565 = vunpack.c.l.b16 %v168
    %v566 = vunpack.c.h.b16 %v168
    %v567 = vunpack.c.l.b16 %v169
    %v568 = vunpack.c.h.b16 %v169
    %v569 = vunpack.c.l.b16 %v170
    %v570 = vunpack.c.h.b16 %v170
    %v571 = vunpack.c.l.b16 %v171
    %v572 = vunpack.c.h.b16 %v171
    %v573 = vunpack.c.l.b16 %v172
    %v574 = vunpack.c.h.b16 %v172
    %v575 = vunpack.c.l.b16 %v173
    %v576 = vunpack.c.h.b16 %v173
    %v577 = vunpack.c.l.b16 %v174
    %v578 = vunpack.c.h.b16 %v174
    %v579 = vunpack.c.l.b16 %v175
    %v580 = vunpack.c.h.b16 %v175
    %v581 = vunpack.c.l.b16 %v176
    %v582 = vunpack.c.h.b16 %v176
    %v583 = vpack.c.b16 %v331, %v327
    %v584 = vpack.c.b16 %v332, %v328
    %v585 = vpack.c.b16 %v333, %v329
    %v586 = vpack.c.b16 %v334, %v330
    %v587 = vpack.c.b16 %v339, %v335
    %v588 = vpack.c.b16 %v340, %v336
    %v589 = vpack.c.b16 %v341, %v337
    %v590 = vpack.c.b16 %v342, %v338
    %v591 = vpack.c.b16 %v347, %v343
    %v592 = vpack.c.b16 %v348, %v344
    %v593 = vpack.c.b16 %v349, %v345
    %v594 = vpack.c.b16 %v350, %v346
    %v595 = vpack.c.b16 %v355, %v351
    %v596 = vpack.c.b16 %v356, %v352
    %v597 = vpack.c.b16 %v357, %v353
    %v598 = vpack.c.b16 %v358, %v354
    %v599 = vpack.c.b16 %v363, %v359
    %v600 = vpack.c.b16 %v364, %v360
    %v601 = vpack.c.b16 %v365, %v361
    %v602 = vpack.c.b16 %v366, %v362
    %v603 = vpack.c.b16 %v371, %v367
    %v604 = vpack.c.b16 %v372, %v368
    %v605 = vpack.c.b16 %v373, %v369
    %v606 = vpack.c.b16 %v374, %v370
    %v607 = vpack.c.b16 %v379, %v375
    %v608 = vpack.c.b16 %v380, %v376
    %v609 = vpack.c.b16 %v381, %v377
    %v610 = vpack.c.b16 %v382, %v378
    %v611 = vpack.c.b16 %v387, %v383
    %v612 = vpack.c.b16 %v388, %v384
    %v613 = vpack.c.b16 %v389, %v385
    %v614 = vpack.c.b16 %v390, %v386
    %v615 = vpack.c.b16 %v395, %v391
    %v616 = vpack.c.b16 %v396, %v392
    %v617 = vpack.c.b16 %v397, %v393
    %v618 = vpack.c.b16 %v398, %v394
    %v619 = vpack.c.b16 %v403, %v399
    %v620 = vpack.c.b16 %v404, %v400
    %v621 = vpack.c.b16 %v405, %v401
    %v622 = vpack.c.b16 %v406, %v402
    %v623 = vpack.c.b16 %v411, %v407
    %v624 = vpack.c.b16 %v412, %v408
    %v625 = vpack.c.b16 %v413, %v409
    %v626 = vpack.c.b16 %v414, %v410
    %v627 = vpack.c.b16 %v419, %v415
    %v628 = vpack.c.b16 %v420, %v416
    %v629 = vpack.c.b16 %v421, %v417
    %v630 = vpack.c.b16 %v422, %v418
    %v631 = vpack.c.b16 %v427, %v423
    %v632 = vpack.c.b16 %v428, %v424
    %v633 = vpack.c.b16 %v429, %v425
    %v634 = vpack.c.b16 %v430, %v426
    %v635 = vpack.c.b16 %v435, %v431
    %v636 = vpack.c.b16 %v436, %v432
    %v637 = vpack.c.b16 %v437, %v433
    %v638 = vpack.c.b16 %v438, %v434
    %v639 = vpack.c.b16 %v443, %v439
    %v640 = vpack.c.b16 %v444, %v440
    %v641 = vpack.c.b16 %v445, %v441
    %v642 = vpack.c.b16 %v446, %v442
    %v643 = vpack.c.b16 %v451, %v447
    %v644 = vpack.c.b16 %v452, %v448
    %v645 = vpack.c.b16 %v453, %v449
    %v646 = vpack.c.b16 %v454, %v450
    %v647 = vpack.c.b16 %v459, %v455
    %v648 = vpack.c.b16 %v460, %v456
    %v649 = vpack.c.b16 %v461, %v457
    %v650 = vpack.c.b16 %v462, %v458
    %v651 = vpack.c.b16 %v467, %v463
    %v652 = vpack.c.b16 %v468, %v464
    %v653 = vpack.c.b16 %v469, %v465
    %v654 = vpack.c.b16 %v470, %v466
    %v655 = vpack.c.b16 %v475, %v471
    %v656 = vpack.c.b16 %v476, %v472
    %v657 = vpack.c.b16 %v477, %v473
    %v658 = vpack.c.b16 %v478, %v474
    %v659 = vpack.c.b16 %v483, %v479
    %v660 = vpack.c.b16 %v484, %v480
    %v661 = vpack.c.b16 %v485, %v481
    %v662 = vpack.c.b16 %v486, %v482
    %v663 = vpack.c.b16 %v491, %v487
    %v664 = vpack.c.b16 %v492, %v488
    %v665 = vpack.c.b16 %v493, %v489
    %v666 = vpack.c.b16 %v494, %v490
    %v667 = vpack.c.b16 %v499, %v495
    %v668 = vpack.c.b16 %v500, %v496
    %v669 = vpack.c.b16 %v501, %v497
    %v670 = vpack.c.b16 %v502, %v498
    %v671 = vpack.c.b16 %v507, %v503
    %v672 = vpack.c.b16 %v508, %v504
    %v673 = vpack.c.b16 %v509, %v505
    %v674 = vpack.c.b16 %v510, %v506
    %v675 = vpack.c.b16 %v515, %v511
    %v676 = vpack.c.b16 %v516, %v512
    %v677 = vpack.c.b16 %v517, %v513
    %v678 = vpack.c.b16 %v518, %v514
    %v679 = vpack.c.b16 %v523, %v519
    %v680 = vpack.c.b16 %v524, %v520
    %v681 = vpack.c.b16 %v525, %v521
    %v682 = vpack.c.b16 %v526, %v522
    %v683 = vpack.c.b16 %v531, %v527
    %v684 = vpack.c.b16 %v532, %v528
    %v685 = vpack.c.b16 %v533, %v529
    %v686 = vpack.c.b16 %v534, %v530
    %v687 = vpack.c.b16 %v539, %v535
    %v688 = vpack.c.b16 %v540, %v536
    %v689 = vpack.c.b16 %v541, %v537
    %v690 = vpack.c.b16 %v542, %v538
    %v691 = vpack.c.b16 %v547, %v543
    %v692 = vpack.c.b16 %v548, %v544
    %v693 = vpack.c.b16 %v549, %v545
    %v694 = vpack.c.b16 %v550, %v546
    %v695 = vpack.c.b16 %v555, %v551
    %v696 = vpack.c.b16 %v556, %v552
    %v697 = vpack.c.b16 %v557, %v553
    %v698 = vpack.c.b16 %v558, %v554
    %v699 = vpack.c.b16 %v563, %v559
    %v700 = vpack.c.b16 %v564, %v560
    %v701 = vpack.c.b16 %v565, %v561
    %v702 = vpack.c.b16 %v566, %v562
    %v703 = vpack.c.b16 %v571, %v567
    %v704 = vpack.c.b16 %v572, %v568
    %v705 = vpack.c.b16 %v573, %v569
    %v706 = vpack.c.b16 %v574, %v570
    %v707 = vpack.c.b16 %v579, %v575
    %v708 = vpack.c.b16 %v580, %v576
    %v709 = vpack.c.b16 %v581, %v577
    %v710 = vpack.c.b16 %v582, %v578
    %839 = vmatprep.subr.bf16.mxu0 %v584
    %840 = vmatpush1.bf16.msra.mxu0 %v583
    %841 = vmatprep.subr.bf16.mxu0 %v588
    %842 = vmatpush1.bf16.msra.mxu0 %v587
    %843 = vmatprep.subr.bf16.mxu0 %v592
    %844 = vmatpush1.bf16.msra.mxu0 %v591
    %845 = vmatprep.subr.bf16.mxu0 %v596
    %846 = vmatpush1.bf16.msra.mxu0 %v595
    %847 = vmatprep.subr.bf16.mxu0 %v600
    %848 = vmatpush1.bf16.msra.mxu0 %v599
    %849 = vmatprep.subr.bf16.mxu0 %v604
    %850 = vmatpush1.bf16.msra.mxu0 %v603
    %851 = vmatprep.subr.bf16.mxu0 %v608
    %852 = vmatpush1.bf16.msra.mxu0 %v607
    %853 = vmatprep.subr.bf16.mxu0 %v612
    %854 = vmatpush1.bf16.msra.mxu0 %v611
    %855 = vmatprep.subr.bf16.mxu0 %v616
    %856 = vmatpush1.bf16.msra.mxu0 %v615
    %857 = vmatprep.subr.bf16.mxu0 %v620
    %858 = vmatpush1.bf16.msra.mxu0 %v619
    %859 = vmatprep.subr.bf16.mxu0 %v624
    %860 = vmatpush1.bf16.msra.mxu0 %v623
    %861 = vmatprep.subr.bf16.mxu0 %v628
    %862 = vmatpush1.bf16.msra.mxu0 %v627
    %863 = vmatprep.subr.bf16.mxu0 %v632
    %864 = vmatpush1.bf16.msra.mxu0 %v631
    %865 = vmatprep.subr.bf16.mxu0 %v636
    %866 = vmatpush1.bf16.msra.mxu0 %v635
    %867 = vmatprep.subr.bf16.mxu0 %v640
    %868 = vmatpush1.bf16.msra.mxu0 %v639
    %869 = vmatprep.subr.bf16.mxu0 %v644
    %870 = vmatpush1.bf16.msra.mxu0 %v643
    %871 = vmatprep.mubr.bf16.mxu0 %v46
    %872 = vmatmul.mubr.bf16.gmra.mrb[0].mxu0 %v45
    %v873 = vpop.f32.mrb[0].mxu0
    %v874 = vadd.f32 %v182, %v873
    %v875 = vpop.f32.mrb[0].mxu0
    %v876 = vadd.f32 %v186, %v875
    %v877 = vpop.f32.mrb[0].mxu0
    %v878 = vpop.f32.mrb[0].mxu0
    %879 = vdwg.mxu0
    %880 = vmatprep.subr.bf16.mxu0 %v648
    %881 = vmatpush1.bf16.msra.mxu0 %v647
    %882 = vmatprep.subr.bf16.mxu0 %v652
    %883 = vmatpush1.bf16.msra.mxu0 %v651
    %884 = vmatprep.subr.bf16.mxu0 %v656
    %885 = vmatpush1.bf16.msra.mxu0 %v655
    %886 = vmatprep.subr.bf16.mxu0 %v660
    %887 = vmatpush1.bf16.msra.mxu0 %v659
    %888 = vmatprep.subr.bf16.mxu0 %v664
    %889 = vmatpush1.bf16.msra.mxu0 %v663
    %890 = vmatprep.subr.bf16.mxu0 %v668
    %891 = vmatpush1.bf16.msra.mxu0 %v667
    %892 = vmatprep.subr.bf16.mxu0 %v672
    %893 = vmatpush1.bf16.msra.mxu0 %v671
    %894 = vmatprep.subr.bf16.mxu0 %v676
    %895 = vmatpush1.bf16.msra.mxu0 %v675
    %896 = vmatprep.subr.bf16.mxu0 %v680
    %897 = vmatpush1.bf16.msra.mxu0 %v679
    %898 = vmatprep.subr.bf16.mxu0 %v684
    %899 = vmatpush1.bf16.msra.mxu0 %v683
    %900 = vmatprep.subr.bf16.mxu0 %v688
    %901 = vmatpush1.bf16.msra.mxu0 %v687
    %902 = vmatprep.subr.bf16.mxu0 %v692
    %903 = vmatpush1.bf16.msra.mxu0 %v691
    %904 = vmatprep.subr.bf16.mxu0 %v696
    %905 = vmatpush1.bf16.msra.mxu0 %v695
    %906 = vmatprep.subr.bf16.mxu0 %v700
    %907 = vmatpush1.bf16.msra.mxu0 %v699
    %908 = vmatprep.subr.bf16.mxu0 %v704
    %909 = vmatpush1.bf16.msra.mxu0 %v703
    %910 = vmatprep.subr.bf16.mxu0 %v708
    %911 = vmatpush1.bf16.msra.mxu0 %v707
    %912 = vmatprep.mubr.bf16.mxu0 %v48
    %913 = vmatmul.mubr.bf16.gmra.mrb[0].mxu0 %v47
    %v914 = vpop.f32.mrb[0].mxu0
    %v915 = vadd.f32 %v874, %v914
    %v916 = vpop.f32.mrb[0].mxu0
    %v917 = vadd.f32 %v876, %v916
    %v918 = vpop.f32.mrb[0].mxu0
    %v919 = vpop.f32.mrb[0].mxu0
    %920 = vdwg.mxu0
    %921 = vmatprep.subr.bf16.mxu0 %v586
    %922 = vmatpush1.bf16.msra.mxu0 %v585
    %923 = vmatprep.subr.bf16.mxu0 %v590
    %924 = vmatpush1.bf16.msra.mxu0 %v589
    %925 = vmatprep.subr.bf16.mxu0 %v594
    %926 = vmatpush1.bf16.msra.mxu0 %v593
    %927 = vmatprep.subr.bf16.mxu0 %v598
    %928 = vmatpush1.bf16.msra.mxu0 %v597
    %929 = vmatprep.subr.bf16.mxu0 %v602
    %930 = vmatpush1.bf16.msra.mxu0 %v601
    %931 = vmatprep.subr.bf16.mxu0 %v606
    %932 = vmatpush1.bf16.msra.mxu0 %v605
    %933 = vmatprep.subr.bf16.mxu0 %v610
    %934 = vmatpush1.bf16.msra.mxu0 %v609
    %935 = vmatprep.subr.bf16.mxu0 %v614
    %936 = vmatpush1.bf16.msra.mxu0 %v613
    %937 = vmatprep.subr.bf16.mxu0 %v618
    %938 = vmatpush1.bf16.msra.mxu0 %v617
    %939 = vmatprep.subr.bf16.mxu0 %v622
    %940 = vmatpush1.bf16.msra.mxu0 %v621
    %941 = vmatprep.subr.bf16.mxu0 %v626
    %942 = vmatpush1.bf16.msra.mxu0 %v625
    %943 = vmatprep.subr.bf16.mxu0 %v630
    %944 = vmatpush1.bf16.msra.mxu0 %v629
    %945 = vmatprep.subr.bf16.mxu0 %v634
    %946 = vmatpush1.bf16.msra.mxu0 %v633
    %947 = vmatprep.subr.bf16.mxu0 %v638
    %948 = vmatpush1.bf16.msra.mxu0 %v637
    %949 = vmatprep.subr.bf16.mxu0 %v642
    %950 = vmatpush1.bf16.msra.mxu0 %v641
    %951 = vmatprep.subr.bf16.mxu0 %v646
    %952 = vmatpush1.bf16.msra.mxu0 %v645
    %953 = vmatprep.mubr.bf16.mxu0 %v46
    %954 = vmatmul.mubr.bf16.gmra.mrb[0].mxu0 %v45
    %v955 = vpop.f32.mrb[0].mxu0
    %v956 = vadd.f32 %v190, %v955
    %v957 = vpop.f32.mrb[0].mxu0
    %v958 = vadd.f32 %v194, %v957
    %v959 = vpop.f32.mrb[0].mxu0
    %v960 = vpop.f32.mrb[0].mxu0
    %961 = vdwg.mxu0
    %962 = vmatprep.subr.bf16.mxu0 %v650
    %963 = vmatpush1.bf16.msra.mxu0 %v649
    %964 = vmatprep.subr.bf16.mxu0 %v654
    %965 = vmatpush1.bf16.msra.mxu0 %v653
    %966 = vmatprep.subr.bf16.mxu0 %v658
    %967 = vmatpush1.bf16.msra.mxu0 %v657
    %968 = vmatprep.subr.bf16.mxu0 %v662
    %969 = vmatpush1.bf16.msra.mxu0 %v661
    %970 = vmatprep.subr.bf16.mxu0 %v666
    %971 = vmatpush1.bf16.msra.mxu0 %v665
    %972 = vmatprep.subr.bf16.mxu0 %v670
    %973 = vmatpush1.bf16.msra.mxu0 %v669
    %974 = vmatprep.subr.bf16.mxu0 %v674
    %975 = vmatpush1.bf16.msra.mxu0 %v673
    %976 = vmatprep.subr.bf16.mxu0 %v678
    %977 = vmatpush1.bf16.msra.mxu0 %v677
    %978 = vmatprep.subr.bf16.mxu0 %v682
    %979 = vmatpush1.bf16.msra.mxu0 %v681
    %980 = vmatprep.subr.bf16.mxu0 %v686
    %981 = vmatpush1.bf16.msra.mxu0 %v685
    %982 = vmatprep.subr.bf16.mxu0 %v690
    %983 = vmatpush1.bf16.msra.mxu0 %v689
    %984 = vmatprep.subr.bf16.mxu0 %v694
    %985 = vmatpush1.bf16.msra.mxu0 %v693
    %986 = vmatprep.subr.bf16.mxu0 %v698
    %987 = vmatpush1.bf16.msra.mxu0 %v697
    %988 = vmatprep.subr.bf16.mxu0 %v702
    %989 = vmatpush1.bf16.msra.mxu0 %v701
    %990 = vmatprep.subr.bf16.mxu0 %v706
    %991 = vmatpush1.bf16.msra.mxu0 %v705
    %992 = vmatprep.subr.bf16.mxu0 %v710
    %993 = vmatpush1.bf16.msra.mxu0 %v709
    %994 = vmatprep.mubr.bf16.mxu0 %v48
    %995 = vmatmul.mubr.bf16.gmra.mrb[0].mxu0 %v47
    %v996 = vpop.f32.mrb[0].mxu0
    %v997 = vadd.f32 %v956, %v996
    %v998 = vpop.f32.mrb[0].mxu0
    %v999 = vadd.f32 %v958, %v998
    %v1000 = vpop.f32.mrb[0].mxu0
    %v1001 = vpop.f32.mrb[0].mxu0
    %1002 = vdwg.mxu0
    %1003 = vst [vmem:[#allocation7] sm:$0xff] %v915
    %1004 = vst [vmem:[#allocation7 + $0x8] sm:$0xff] %v917
    %1005 = vst [vmem:[#allocation7 + $0x10] sm:$0xff] %v997
    %1006 = vst [vmem:[#allocation7 + $0x18] sm:$0xff] %v999
    // Predicated region
    $region22: #{tpu_custom_call.1} parent=1 // pred_check
      _
    $region23: #{tpu_custom_call.1} parent=1 // pred_check_branch
      %1008 = sbr.rel (0) target = $region25
    $region24: #{tpu_custom_call.1} parent=1 // pred_region
      %s1010 = ssub.s32 512, 512
      %1011 = vsyncadd [#allocation4], %s1010
      %s1013 = sshll.u32 [#allocation7], 4
      %s1014 = int_to_ptr.vmem [resolvable:$true] %s1013
      %1016 = dma.vmem_to_hbm [thread:$0]  %s1014, 512, %s3, [#allocation4]
    $region25: #{tpu_custom_call.1} parent=1 // pred_fallthru
      _
    // Predicated region
    $region26: #{tpu_custom_call.1} parent=1 // pred_check
      _
    $region27: #{tpu_custom_call.1} parent=1 // pred_check_branch
      %1018 = sbr.rel (0) target = $region29
    $region28: #{tpu_custom_call.1} parent=1 // pred_region
      %1019 = dma.done [#allocation4], 512
    $region29: #{tpu_custom_call.1} parent=1 // pred_fallthru
      _
    %1020 = vsyncpa [#allocation3], 1
    %1021 = vsyncpa [#allocation6], 1
    %1022 = vsyncpa [#allocation4], 1

// kernel: tpu_custom_call.1
$region0: #{tpu_custom_call.1}
  #allocation0 [shape = 'u32[]', space=smem, size = 0x4, offset = 0x4, fixed_abs, tag = 'smem constant byte address 0x4 - core index']
  #allocation1 [shape = 'u32[144,128]{1,0:T(1,128)}', space=vmem, size = 0x12000, scoped, tag = 'internal scratch']
  %s0 = inlined_call_operand.hbm [shape: f32[8,512], index: 0, kind: input, shape index: {}]
  %s1 = inlined_call_operand.hbm [shape: bf16[512,512], index: 1, kind: input, shape index: {}]
  %s2 = inlined_call_operand.vmem [shape: f32[1,512], index: 2, kind: input, shape index: {}]
  %s3 = inlined_call_operand.hbm [shape: f32[8,512], index: 3, kind: output, shape index: {}]
  %s4 = sld [smem:[#allocation0]]
  $region30: #{tpu_custom_call.1} parent=0
    _
  %s6 = ssub.s32 1, %s4
  %s7 = scalar_select 0, %s6, %s4
  $region1: #{tpu_custom_call.1} parent=0
    #allocation2 [shape = 'u8[16384]{0}', space=vmem, size = 0x4000, scoped, tag = 'input window, operand 0, single buffered']
    #allocation3 [shape = 's32[1]{0}', space=sflag, size = 0x4, scoped, tag = 'scoped memory for tpu_custom_call.1']
    #allocation4 [shape = 's32[1]{0}', space=sflag, size = 0x4, scoped, tag = 'scoped memory for tpu_custom_call.1']
    #allocation5 [shape = 'u8[524288]{0}', space=vmem, size = 0x80000, scoped, tag = 'input window, operand 1, single buffered']
    #allocation6 [shape = 's32[1]{0}', space=sflag, size = 0x4, scoped, tag = 'scoped memory for tpu_custom_call.1']
    #allocation7 [shape = 'u8[16384]{0}', space=vmem, size = 0x4000, scoped, tag = 'output window, operand 0, single buffered']
    %8 = vsyncpa [#allocation3], 0
    %9 = vsyncpa [#allocation6], 0
    %10 = vsyncpa [#allocation4], 0
    // Predicated region
    $region2: #{tpu_custom_call.1} parent=1 // pred_check
      _
    $region3: #{tpu_custom_call.1} parent=1 // pred_check_branch
      %12 = sbr.rel (0) target = $region5
    $region4: #{tpu_custom_call.1} parent=1 // pred_region
      %s14 = ssub.s32 512, 512
      %15 = vsyncadd [#allocation3], %s14
      %s17 = sshll.u32 [#allocation2], 4
      %s18 = int_to_ptr.vmem [resolvable:$true] %s17
      %20 = dma.hbm_to_vmem [thread:$0]  %s0, 512, %s18, [#allocation3]
    $region5: #{tpu_custom_call.1} parent=1 // pred_fallthru
      _
    // Predicated region
    $region6: #{tpu_custom_call.1} parent=1 // pred_check
      _
    $region7: #{tpu_custom_call.1} parent=1 // pred_check_branch
      %22 = sbr.rel (0) target = $region9
    $region8: #{tpu_custom_call.1} parent=1 // pred_region
      %s24 = ssub.s32 16384, 16384
      %25 = vsyncadd [#allocation6], %s24
      %s26 = sshll.u32 [#allocation5], 4
      %s27 = int_to_ptr.vmem [resolvable:$true] %s26
      %32 = dma.hbm_to_vmem [thread:$0]  %s1, 16384, %s27, [#allocation6], 256, 256, 16
    $region9: #{tpu_custom_call.1} parent=1 // pred_fallthru
      _
    // Predicated region
    $region10: #{tpu_custom_call.1} parent=1 // pred_check
      _
    $region11: #{tpu_custom_call.1} parent=1 // pred_check_branch
      %34 = sbr.rel (0) target = $region13
    $region12: #{tpu_custom_call.1} parent=1 // pred_region
      _
    $region13: #{tpu_custom_call.1} parent=1 // pred_fallthru
      _
    // Predicated region
    $region14: #{tpu_custom_call.1} parent=1 // pred_check
      _
    $region15: #{tpu_custom_call.1} parent=1 // pred_check_branch
      %36 = sbr.rel (0) target = $region17
    $region16: #{tpu_custom_call.1} parent=1 // pred_region
      %37 = dma.done [#allocation3], 512
    $region17: #{tpu_custom_call.1} parent=1 // pred_fallthru
      _
    // Predicated region
    $region18: #{tpu_custom_call.1} parent=1 // pred_check
      _
    $region19: #{tpu_custom_call.1} parent=1 // pred_check_branch
      %39 = sbr.rel (0) target = $region21
    $region20: #{tpu_custom_call.1} parent=1 // pred_region
      %40 = dma.done [#allocation6], 16384
    $region21: #{tpu_custom_call.1} parent=1 // pred_fallthru
      _
    %v41 = vld [vmem:[#allocation2] sm:$0xff]
    %v42 = vld [vmem:[#allocation2 + $0x8] sm:$0xff]
    %v43 = vld [vmem:[#allocation2 + $0x10] sm:$0xff]
    %v44 = vld [vmem:[#allocation2 + $0x18] sm:$0xff]
    %v45 = vpack.c.bf16 %v41, %v41
    %v46 = vpack.c.bf16 %v42, %v42
    %v47 = vpack.c.bf16 %v43, %v43
    %v48 = vpack.c.bf16 %v44, %v44
    %v49 = vld [vmem:[#allocation5] sm:$0xff]
    %v50 = vld [vmem:[#allocation5 + $0x8] sm:$0xff]
    %v51 = vld [vmem:[#allocation5 + $0x10] sm:$0xff]
    %v52 = vld [vmem:[#allocation5 + $0x18] sm:$0xff]
    %v53 = vld [vmem:[#allocation5 + $0x20] sm:$0xff]
    %v54 = vld [vmem:[#allocation5 + $0x28] sm:$0xff]
    %v55 = vld [vmem:[#allocation5 + $0x30] sm:$0xff]
    %v56 = vld [vmem:[#allocation5 + $0x38] sm:$0xff]
    %v57 = vld [vmem:[#allocation5 + $0x40] sm:$0xff]
    %v58 = vld [vmem:[#allocation5 + $0x48] sm:$0xff]
    %v59 = vld [vmem:[#allocation5 + $0x50] sm:$0xff]
    %v60 = vld [vmem:[#allocation5 + $0x58] sm:$0xff]
    %v61 = vld [vmem:[#allocation5 + $0x60] sm:$0xff]
    %v62 = vld [vmem:[#allocation5 + $0x68] sm:$0xff]
    %v63 = vld [vmem:[#allocation5 + $0x70] sm:$0xff]
    %v64 = vld [vmem:[#allocation5 + $0x78] sm:$0xff]
    %v65 = vld [vmem:[#allocation5 + $0x80] sm:$0xff]
    %v66 = vld [vmem:[#allocation5 + $0x88] sm:$0xff]
    %v67 = vld [vmem:[#allocation5 + $0x90] sm:$0xff]
    %v68 = vld [vmem:[#allocation5 + $0x98] sm:$0xff]
    %v69 = vld [vmem:[#allocation5 + $0xa0] sm:$0xff]
    %v70 = vld [vmem:[#allocation5 + $0xa8] sm:$0xff]
    %v71 = vld [vmem:[#allocation5 + $0xb0] sm:$0xff]
    %v72 = vld [vmem:[#allocation5 + $0xb8] sm:$0xff]
    %v73 = vld [vmem:[#allocation5 + $0xc0] sm:$0xff]
    %v74 = vld [vmem:[#allocation5 + $0xc8] sm:$0xff]
    %v75 = vld [vmem:[#allocation5 + $0xd0] sm:$0xff]
    %v76 = vld [vmem:[#allocation5 + $0xd8] sm:$0xff]
    %v77 = vld [vmem:[#allocation5 + $0xe0] sm:$0xff]
    %v78 = vld [vmem:[#allocation5 + $0xe8] sm:$0xff]
    %v79 = vld [vmem:[#allocation5 + $0xf0] sm:$0xff]
    %v80 = vld [vmem:[#allocation5 + $0xf8] sm:$0xff]
    %v81 = vld [vmem:[#allocation5 + $0x100] sm:$0xff]
    %v82 = vld [vmem:[#allocation5 + $0x108] sm:$0xff]
    %v83 = vld [vmem:[#allocation5 + $0x110] sm:$0xff]
    %v84 = vld [vmem:[#allocation5 + $0x118] sm:$0xff]
    %v85 = vld [vmem:[#allocation5 + $0x120] sm:$0xff]
    %v86 = vld [vmem:[#allocation5 + $0x128] sm:$0xff]
    %v87 = vld [vmem:[#allocation5 + $0x130] sm:$0xff]
    %v88 = vld [vmem:[#allocation5 + $0x138] sm:$0xff]
    %v89 = vld [vmem:[#allocation5 + $0x140] sm:$0xff]
    %v90 = vld [vmem:[#allocation5 + $0x148] sm:$0xff]
    %v91 = vld [vmem:[#allocation5 + $0x150] sm:$0xff]
    %v92 = vld [vmem:[#allocation5 + $0x158] sm:$0xff]
    %v93 = vld [vmem:[#allocation5 + $0x160] sm:$0xff]
    %v94 = vld [vmem:[#allocation5 + $0x168] sm:$0xff]
    %v95 = vld [vmem:[#allocation5 + $0x170] sm:$0xff]
    %v96 = vld [vmem:[#allocation5 + $0x178] sm:$0xff]
    %v97 = vld [vmem:[#allocation5 + $0x180] sm:$0xff]
    %v98 = vld [vmem:[#allocation5 + $0x188] sm:$0xff]
    %v99 = vld [vmem:[#allocation5 + $0x190] sm:$0xff]
    %v100 = vld [vmem:[#allocation5 + $0x198] sm:$0xff]
    %v101 = vld [vmem:[#allocation5 + $0x1a0] sm:$0xff]
    %v102 = vld [vmem:[#allocation5 + $0x1a8] sm:$0xff]
    %v103 = vld [vmem:[#allocation5 + $0x1b0] sm:$0xff]
    %v104 = vld [vmem:[#allocation5 + $0x1b8] sm:$0xff]
    %v105 = vld [vmem:[#allocation5 + $0x1c0] sm:$0xff]
    %v106 = vld [vmem:[#allocation5 + $0x1c8] sm:$0xff]
    %v107 = vld [vmem:[#allocation5 + $0x1d0] sm:$0xff]
    %v108 = vld [vmem:[#allocation5 + $0x1d8] sm:$0xff]
    %v109 = vld [vmem:[#allocation5 + $0x1e0] sm:$0xff]
    %v110 = vld [vmem:[#allocation5 + $0x1e8] sm:$0xff]
    %v111 = vld [vmem:[#allocation5 + $0x1f0] sm:$0xff]
    %v112 = vld [vmem:[#allocation5 + $0x1f8] sm:$0xff]
    %v113 = vld [vmem:[#allocation5 + $0x200] sm:$0xff]
    %v114 = vld [vmem:[#allocation5 + $0x208] sm:$0xff]
    %v115 = vld [vmem:[#allocation5 + $0x210] sm:$0xff]
    %v116 = vld [vmem:[#allocation5 + $0x218] sm:$0xff]
    %v117 = vld [vmem:[#allocation5 + $0x220] sm:$0xff]
    %v118 = vld [vmem:[#allocation5 + $0x228] sm:$0xff]
    %v119 = vld [vmem:[#allocation5 + $0x230] sm:$0xff]
    %v120 = vld [vmem:[#allocation5 + $0x238] sm:$0xff]
    %v121 = vld [vmem:[#allocation5 + $0x240] sm:$0xff]
    %v122 = vld [vmem:[#allocation5 + $0x248] sm:$0xff]
    %v123 = vld [vmem:[#allocation5 + $0x250] sm:$0xff]
    %v124 = vld [vmem:[#allocation5 + $0x258] sm:$0xff]
    %v125 = vld [vmem:[#allocation5 + $0x260] sm:$0xff]
    %v126 = vld [vmem:[#allocation5 + $0x268] sm:$0xff]
    %v127 = vld [vmem:[#allocation5 + $0x270] sm:$0xff]
    %v128 = vld [vmem:[#allocation5 + $0x278] sm:$0xff]
    %v129 = vld [vmem:[#allocation5 + $0x280] sm:$0xff]
    %v130 = vld [vmem:[#allocation5 + $0x288] sm:$0xff]
    %v131 = vld [vmem:[#allocation5 + $0x290] sm:$0xff]
    %v132 = vld [vmem:[#allocation5 + $0x298] sm:$0xff]
    %v133 = vld [vmem:[#allocation5 + $0x2a0] sm:$0xff]
    %v134 = vld [vmem:[#allocation5 + $0x2a8] sm:$0xff]
    %v135 = vld [vmem:[#allocation5 + $0x2b0] sm:$0xff]
    %v136 = vld [vmem:[#allocation5 + $0x2b8] sm:$0xff]
    %v137 = vld [vmem:[#allocation5 + $0x2c0] sm:$0xff]
    %v138 = vld [vmem:[#allocation5 + $0x2c8] sm:$0xff]
    %v139 = vld [vmem:[#allocation5 + $0x2d0] sm:$0xff]
    %v140 = vld [vmem:[#allocation5 + $0x2d8] sm:$0xff]
    %v141 = vld [vmem:[#allocation5 + $0x2e0] sm:$0xff]
    %v142 = vld [vmem:[#allocation5 + $0x2e8] sm:$0xff]
    %v143 = vld [vmem:[#allocation5 + $0x2f0] sm:$0xff]
    %v144 = vld [vmem:[#allocation5 + $0x2f8] sm:$0xff]
    %v145 = vld [vmem:[#allocation5 + $0x300] sm:$0xff]
    %v146 = vld [vmem:[#allocation5 + $0x308] sm:$0xff]
    %v147 = vld [vmem:[#allocation5 + $0x310] sm:$0xff]
    %v148 = vld [vmem:[#allocation5 + $0x318] sm:$0xff]
    %v149 = vld [vmem:[#allocation5 + $0x320] sm:$0xff]
    %v150 = vld [vmem:[#allocation5 + $0x328] sm:$0xff]
    %v151 = vld [vmem:[#allocation5 + $0x330] sm:$0xff]
    %v152 = vld [vmem:[#allocation5 + $0x338] sm:$0xff]
    %v153 = vld [vmem:[#allocation5 + $0x340] sm:$0xff]
    %v154 = vld [vmem:[#allocation5 + $0x348] sm:$0xff]
    %v155 = vld [vmem:[#allocation5 + $0x350] sm:$0xff]
    %v156 = vld [vmem:[#allocation5 + $0x358] sm:$0xff]
    %v157 = vld [vmem:[#allocation5 + $0x360] sm:$0xff]
    %v158 = vld [vmem:[#allocation5 + $0x368] sm:$0xff]
    %v159 = vld [vmem:[#allocation5 + $0x370] sm:$0xff]
    %v160 = vld [vmem:[#allocation5 + $0x378] sm:$0xff]
    %v161 = vld [vmem:[#allocation5 + $0x380] sm:$0xff]
    %v162 = vld [vmem:[#allocation5 + $0x388] sm:$0xff]
    %v163 = vld [vmem:[#allocation5 + $0x390] sm:$0xff]
    %v164 = vld [vmem:[#allocation5 + $0x398] sm:$0xff]
    %v165 = vld [vmem:[#allocation5 + $0x3a0] sm:$0xff]
    %v166 = vld [vmem:[#allocation5 + $0x3a8] sm:$0xff]
    %v167 = vld [vmem:[#allocation5 + $0x3b0] sm:$0xff]
    %v168 = vld [vmem:[#allocation5 + $0x3b8] sm:$0xff]
    %v169 = vld [vmem:[#allocation5 + $0x3c0] sm:$0xff]
    %v170 = vld [vmem:[#allocation5 + $0x3c8] sm:$0xff]
    %v171 = vld [vmem:[#allocation5 + $0x3d0] sm:$0xff]
    %v172 = vld [vmem:[#allocation5 + $0x3d8] sm:$0xff]
    %v173 = vld [vmem:[#allocation5 + $0x3e0] sm:$0xff]
    %v174 = vld [vmem:[#allocation5 + $0x3e8] sm:$0xff]
    %v175 = vld [vmem:[#allocation5 + $0x3f0] sm:$0xff]
    %v176 = vld [vmem:[#allocation5 + $0x3f8] sm:$0xff]
    %v177 = vld [vmem:[%s2] sm:$0xf]
    %v179 = vlaneseq
    %v180 = vshrl.u32 %v179, 7
    %v181 = vsub.s32 0, %v180
    %v182 = vrot.slane %v177, %v181
    %v183 = vlaneseq
    %v184 = vshrl.u32 %v183, 7
    %v185 = vsub.s32 1, %v184
    %v186 = vrot.slane %v177, %v185
    %v187 = vlaneseq
    %v188 = vshrl.u32 %v187, 7
    %v189 = vsub.s32 2, %v188
    %v190 = vrot.slane %v177, %v189
    %v191 = vlaneseq
    %v192 = vshrl.u32 %v191, 7
    %v193 = vsub.s32 3, %v192
    %v194 = vrot.slane %v177, %v193
    %v327 = vunpack.c.l.b16 %v49
    %v328 = vunpack.c.h.b16 %v49
    %v329 = vunpack.c.l.b16 %v50
    %v330 = vunpack.c.h.b16 %v50
    %v331 = vunpack.c.l.b16 %v51
    %v332 = vunpack.c.h.b16 %v51
    %v333 = vunpack.c.l.b16 %v52
    %v334 = vunpack.c.h.b16 %v52
    %v335 = vunpack.c.l.b16 %v53
    %v336 = vunpack.c.h.b16 %v53
    %v337 = vunpack.c.l.b16 %v54
    %v338 = vunpack.c.h.b16 %v54
    %v339 = vunpack.c.l.b16 %v55
    %v340 = vunpack.c.h.b16 %v55
    %v341 = vunpack.c.l.b16 %v56
    %v342 = vunpack.c.h.b16 %v56
    %v343 = vunpack.c.l.b16 %v57
    %v344 = vunpack.c.h.b16 %v57
    %v345 = vunpack.c.l.b16 %v58
    %v346 = vunpack.c.h.b16 %v58
    %v347 = vunpack.c.l.b16 %v59
    %v348 = vunpack.c.h.b16 %v59
    %v349 = vunpack.c.l.b16 %v60
    %v350 = vunpack.c.h.b16 %v60
    %v351 = vunpack.c.l.b16 %v61
    %v352 = vunpack.c.h.b16 %v61
    %v353 = vunpack.c.l.b16 %v62
    %v354 = vunpack.c.h.b16 %v62
    %v355 = vunpack.c.l.b16 %v63
    %v356 = vunpack.c.h.b16 %v63
    %v357 = vunpack.c.l.b16 %v64
    %v358 = vunpack.c.h.b16 %v64
    %v359 = vunpack.c.l.b16 %v65
    %v360 = vunpack.c.h.b16 %v65
    %v361 = vunpack.c.l.b16 %v66
    %v362 = vunpack.c.h.b16 %v66
    %v363 = vunpack.c.l.b16 %v67
    %v364 = vunpack.c.h.b16 %v67
    %v365 = vunpack.c.l.b16 %v68
    %v366 = vunpack.c.h.b16 %v68
    %v367 = vunpack.c.l.b16 %v69
    %v368 = vunpack.c.h.b16 %v69
    %v369 = vunpack.c.l.b16 %v70
    %v370 = vunpack.c.h.b16 %v70
    %v371 = vunpack.c.l.b16 %v71
    %v372 = vunpack.c.h.b16 %v71
    %v373 = vunpack.c.l.b16 %v72
    %v374 = vunpack.c.h.b16 %v72
    %v375 = vunpack.c.l.b16 %v73
    %v376 = vunpack.c.h.b16 %v73
    %v377 = vunpack.c.l.b16 %v74
    %v378 = vunpack.c.h.b16 %v74
    %v379 = vunpack.c.l.b16 %v75
    %v380 = vunpack.c.h.b16 %v75
    %v381 = vunpack.c.l.b16 %v76
    %v382 = vunpack.c.h.b16 %v76
    %v383 = vunpack.c.l.b16 %v77
    %v384 = vunpack.c.h.b16 %v77
    %v385 = vunpack.c.l.b16 %v78
    %v386 = vunpack.c.h.b16 %v78
    %v387 = vunpack.c.l.b16 %v79
    %v388 = vunpack.c.h.b16 %v79
    %v389 = vunpack.c.l.b16 %v80
    %v390 = vunpack.c.h.b16 %v80
    %v391 = vunpack.c.l.b16 %v81
    %v392 = vunpack.c.h.b16 %v81
    %v393 = vunpack.c.l.b16 %v82
    %v394 = vunpack.c.h.b16 %v82
    %v395 = vunpack.c.l.b16 %v83
    %v396 = vunpack.c.h.b16 %v83
    %v397 = vunpack.c.l.b16 %v84
    %v398 = vunpack.c.h.b16 %v84
    %v399 = vunpack.c.l.b16 %v85
    %v400 = vunpack.c.h.b16 %v85
    %v401 = vunpack.c.l.b16 %v86
    %v402 = vunpack.c.h.b16 %v86
    %v403 = vunpack.c.l.b16 %v87
    %v404 = vunpack.c.h.b16 %v87
    %v405 = vunpack.c.l.b16 %v88
    %v406 = vunpack.c.h.b16 %v88
    %v407 = vunpack.c.l.b16 %v89
    %v408 = vunpack.c.h.b16 %v89
    %v409 = vunpack.c.l.b16 %v90
    %v410 = vunpack.c.h.b16 %v90
    %v411 = vunpack.c.l.b16 %v91
    %v412 = vunpack.c.h.b16 %v91
    %v413 = vunpack.c.l.b16 %v92
    %v414 = vunpack.c.h.b16 %v92
    %v415 = vunpack.c.l.b16 %v93
    %v416 = vunpack.c.h.b16 %v93
    %v417 = vunpack.c.l.b16 %v94
    %v418 = vunpack.c.h.b16 %v94
    %v419 = vunpack.c.l.b16 %v95
    %v420 = vunpack.c.h.b16 %v95
    %v421 = vunpack.c.l.b16 %v96
    %v422 = vunpack.c.h.b16 %v96
    %v423 = vunpack.c.l.b16 %v97
    %v424 = vunpack.c.h.b16 %v97
    %v425 = vunpack.c.l.b16 %v98
    %v426 = vunpack.c.h.b16 %v98
    %v427 = vunpack.c.l.b16 %v99
    %v428 = vunpack.c.h.b16 %v99
    %v429 = vunpack.c.l.b16 %v100
    %v430 = vunpack.c.h.b16 %v100
    %v431 = vunpack.c.l.b16 %v101
    %v432 = vunpack.c.h.b16 %v101
    %v433 = vunpack.c.l.b16 %v102
    %v434 = vunpack.c.h.b16 %v102
    %v435 = vunpack.c.l.b16 %v103
    %v436 = vunpack.c.h.b16 %v103
    %v437 = vunpack.c.l.b16 %v104
    %v438 = vunpack.c.h.b16 %v104
    %v439 = vunpack.c.l.b16 %v105
    %v440 = vunpack.c.h.b16 %v105
    %v441 = vunpack.c.l.b16 %v106
    %v442 = vunpack.c.h.b16 %v106
    %v443 = vunpack.c.l.b16 %v107
    %v444 = vunpack.c.h.b16 %v107
    %v445 = vunpack.c.l.b16 %v108
    %v446 = vunpack.c.h.b16 %v108
    %v447 = vunpack.c.l.b16 %v109
    %v448 = vunpack.c.h.b16 %v109
    %v449 = vunpack.c.l.b16 %v110
    %v450 = vunpack.c.h.b16 %v110
    %v451 = vunpack.c.l.b16 %v111
    %v452 = vunpack.c.h.b16 %v111
    %v453 = vunpack.c.l.b16 %v112
    %v454 = vunpack.c.h.b16 %v112
    %v455 = vunpack.c.l.b16 %v113
    %v456 = vunpack.c.h.b16 %v113
    %v457 = vunpack.c.l.b16 %v114
    %v458 = vunpack.c.h.b16 %v114
    %v459 = vunpack.c.l.b16 %v115
    %v460 = vunpack.c.h.b16 %v115
    %v461 = vunpack.c.l.b16 %v116
    %v462 = vunpack.c.h.b16 %v116
    %v463 = vunpack.c.l.b16 %v117
    %v464 = vunpack.c.h.b16 %v117
    %v465 = vunpack.c.l.b16 %v118
    %v466 = vunpack.c.h.b16 %v118
    %v467 = vunpack.c.l.b16 %v119
    %v468 = vunpack.c.h.b16 %v119
    %v469 = vunpack.c.l.b16 %v120
    %v470 = vunpack.c.h.b16 %v120
    %v471 = vunpack.c.l.b16 %v121
    %v472 = vunpack.c.h.b16 %v121
    %v473 = vunpack.c.l.b16 %v122
    %v474 = vunpack.c.h.b16 %v122
    %v475 = vunpack.c.l.b16 %v123
    %v476 = vunpack.c.h.b16 %v123
    %v477 = vunpack.c.l.b16 %v124
    %v478 = vunpack.c.h.b16 %v124
    %v479 = vunpack.c.l.b16 %v125
    %v480 = vunpack.c.h.b16 %v125
    %v481 = vunpack.c.l.b16 %v126
    %v482 = vunpack.c.h.b16 %v126
    %v483 = vunpack.c.l.b16 %v127
    %v484 = vunpack.c.h.b16 %v127
    %v485 = vunpack.c.l.b16 %v128
    %v486 = vunpack.c.h.b16 %v128
    %v487 = vunpack.c.l.b16 %v129
    %v488 = vunpack.c.h.b16 %v129
    %v489 = vunpack.c.l.b16 %v130
    %v490 = vunpack.c.h.b16 %v130
    %v491 = vunpack.c.l.b16 %v131
    %v492 = vunpack.c.h.b16 %v131
    %v493 = vunpack.c.l.b16 %v132
    %v494 = vunpack.c.h.b16 %v132
    %v495 = vunpack.c.l.b16 %v133
    %v496 = vunpack.c.h.b16 %v133
    %v497 = vunpack.c.l.b16 %v134
    %v498 = vunpack.c.h.b16 %v134
    %v499 = vunpack.c.l.b16 %v135
    %v500 = vunpack.c.h.b16 %v135
    %v501 = vunpack.c.l.b16 %v136
    %v502 = vunpack.c.h.b16 %v136
    %v503 = vunpack.c.l.b16 %v137
    %v504 = vunpack.c.h.b16 %v137
    %v505 = vunpack.c.l.b16 %v138
    %v506 = vunpack.c.h.b16 %v138
    %v507 = vunpack.c.l.b16 %v139
    %v508 = vunpack.c.h.b16 %v139
    %v509 = vunpack.c.l.b16 %v140
    %v510 = vunpack.c.h.b16 %v140
    %v511 = vunpack.c.l.b16 %v141
    %v512 = vunpack.c.h.b16 %v141
    %v513 = vunpack.c.l.b16 %v142
    %v514 = vunpack.c.h.b16 %v142
    %v515 = vunpack.c.l.b16 %v143
    %v516 = vunpack.c.h.b16 %v143
    %v517 = vunpack.c.l.b16 %v144
    %v518 = vunpack.c.h.b16 %v144
    %v519 = vunpack.c.l.b16 %v145
    %v520 = vunpack.c.h.b16 %v145
    %v521 = vunpack.c.l.b16 %v146
    %v522 = vunpack.c.h.b16 %v146
    %v523 = vunpack.c.l.b16 %v147
    %v524 = vunpack.c.h.b16 %v147
    %v525 = vunpack.c.l.b16 %v148
    %v526 = vunpack.c.h.b16 %v148
    %v527 = vunpack.c.l.b16 %v149
    %v528 = vunpack.c.h.b16 %v149
    %v529 = vunpack.c.l.b16 %v150
    %v530 = vunpack.c.h.b16 %v150
    %v531 = vunpack.c.l.b16 %v151
    %v532 = vunpack.c.h.b16 %v151
    %v533 = vunpack.c.l.b16 %v152
    %v534 = vunpack.c.h.b16 %v152
    %v535 = vunpack.c.l.b16 %v153
    %v536 = vunpack.c.h.b16 %v153
    %v537 = vunpack.c.l.b16 %v154
    %v538 = vunpack.c.h.b16 %v154
    %v539 = vunpack.c.l.b16 %v155
    %v540 = vunpack.c.h.b16 %v155
    %v541 = vunpack.c.l.b16 %v156
    %v542 = vunpack.c.h.b16 %v156
    %v543 = vunpack.c.l.b16 %v157
    %v544 = vunpack.c.h.b16 %v157
    %v545 = vunpack.c.l.b16 %v158
    %v546 = vunpack.c.h.b16 %v158
    %v547 = vunpack.c.l.b16 %v159
    %v548 = vunpack.c.h.b16 %v159
    %v549 = vunpack.c.l.b16 %v160
    %v550 = vunpack.c.h.b16 %v160
    %v551 = vunpack.c.l.b16 %v161
    %v552 = vunpack.c.h.b16 %v161
    %v553 = vunpack.c.l.b16 %v162
    %v554 = vunpack.c.h.b16 %v162
    %v555 = vunpack.c.l.b16 %v163
    %v556 = vunpack.c.h.b16 %v163
    %v557 = vunpack.c.l.b16 %v164
    %v558 = vunpack.c.h.b16 %v164
    %v559 = vunpack.c.l.b16 %v165
    %v560 = vunpack.c.h.b16 %v165
    %v561 = vunpack.c.l.b16 %v166
    %v562 = vunpack.c.h.b16 %v166
    %v563 = vunpack.c.l.b16 %v167
    %v564 = vunpack.c.h.b16 %v167
    %v565 = vunpack.c.l.b16 %v168
    %v566 = vunpack.c.h.b16 %v168
    %v567 = vunpack.c.l.b16 %v169
    %v568 = vunpack.c.h.b16 %v169
    %v569 = vunpack.c.l.b16 %v170
    %v570 = vunpack.c.h.b16 %v170
    %v571 = vunpack.c.l.b16 %v171
    %v572 = vunpack.c.h.b16 %v171
    %v573 = vunpack.c.l.b16 %v172
    %v574 = vunpack.c.h.b16 %v172
    %v575 = vunpack.c.l.b16 %v173
    %v576 = vunpack.c.h.b16 %v173
    %v577 = vunpack.c.l.b16 %v174
    %v578 = vunpack.c.h.b16 %v174
    %v579 = vunpack.c.l.b16 %v175
    %v580 = vunpack.c.h.b16 %v175
    %v581 = vunpack.c.l.b16 %v176
    %v582 = vunpack.c.h.b16 %v176
    %v583 = vpack.c.b16 %v331, %v327
    %v584 = vpack.c.b16 %v332, %v328
    %v585 = vpack.c.b16 %v333, %v329
    %v586 = vpack.c.b16 %v334, %v330
    %v587 = vpack.c.b16 %v339, %v335
    %v588 = vpack.c.b16 %v340, %v336
    %v589 = vpack.c.b16 %v341, %v337
    %v590 = vpack.c.b16 %v342, %v338
    %v591 = vpack.c.b16 %v347, %v343
    %v592 = vpack.c.b16 %v348, %v344
    %v593 = vpack.c.b16 %v349, %v345
    %v594 = vpack.c.b16 %v350, %v346
    %v595 = vpack.c.b16 %v355, %v351
    %v596 = vpack.c.b16 %v356, %v352
    %v597 = vpack.c.b16 %v357, %v353
    %v598 = vpack.c.b16 %v358, %v354
    %v599 = vpack.c.b16 %v363, %v359
    %v600 = vpack.c.b16 %v364, %v360
    %v601 = vpack.c.b16 %v365, %v361
    %v602 = vpack.c.b16 %v366, %v362
    %v603 = vpack.c.b16 %v371, %v367
    %v604 = vpack.c.b16 %v372, %v368
    %v605 = vpack.c.b16 %v373, %v369
    %v606 = vpack.c.b16 %v374, %v370
    %v607 = vpack.c.b16 %v379, %v375
    %v608 = vpack.c.b16 %v380, %v376
    %v609 = vpack.c.b16 %v381, %v377
    %v610 = vpack.c.b16 %v382, %v378
    %v611 = vpack.c.b16 %v387, %v383
    %v612 = vpack.c.b16 %v388, %v384
    %v613 = vpack.c.b16 %v389, %v385
    %v614 = vpack.c.b16 %v390, %v386
    %v615 = vpack.c.b16 %v395, %v391
    %v616 = vpack.c.b16 %v396, %v392
    %v617 = vpack.c.b16 %v397, %v393
    %v618 = vpack.c.b16 %v398, %v394
    %v619 = vpack.c.b16 %v403, %v399
    %v620 = vpack.c.b16 %v404, %v400
    %v621 = vpack.c.b16 %v405, %v401
    %v622 = vpack.c.b16 %v406, %v402
    %v623 = vpack.c.b16 %v411, %v407
    %v624 = vpack.c.b16 %v412, %v408
    %v625 = vpack.c.b16 %v413, %v409
    %v626 = vpack.c.b16 %v414, %v410
    %v627 = vpack.c.b16 %v419, %v415
    %v628 = vpack.c.b16 %v420, %v416
    %v629 = vpack.c.b16 %v421, %v417
    %v630 = vpack.c.b16 %v422, %v418
    %v631 = vpack.c.b16 %v427, %v423
    %v632 = vpack.c.b16 %v428, %v424
    %v633 = vpack.c.b16 %v429, %v425
    %v634 = vpack.c.b16 %v430, %v426
    %v635 = vpack.c.b16 %v435, %v431
    %v636 = vpack.c.b16 %v436, %v432
    %v637 = vpack.c.b16 %v437, %v433
    %v638 = vpack.c.b16 %v438, %v434
    %v639 = vpack.c.b16 %v443, %v439
    %v640 = vpack.c.b16 %v444, %v440
    %v641 = vpack.c.b16 %v445, %v441
    %v642 = vpack.c.b16 %v446, %v442
    %v643 = vpack.c.b16 %v451, %v447
    %v644 = vpack.c.b16 %v452, %v448
    %v645 = vpack.c.b16 %v453, %v449
    %v646 = vpack.c.b16 %v454, %v450
    %v647 = vpack.c.b16 %v459, %v455
    %v648 = vpack.c.b16 %v460, %v456
    %v649 = vpack.c.b16 %v461, %v457
    %v650 = vpack.c.b16 %v462, %v458
    %v651 = vpack.c.b16 %v467, %v463
    %v652 = vpack.c.b16 %v468, %v464
    %v653 = vpack.c.b16 %v469, %v465
    %v654 = vpack.c.b16 %v470, %v466
    %v655 = vpack.c.b16 %v475, %v471
    %v656 = vpack.c.b16 %v476, %v472
    %v657 = vpack.c.b16 %v477, %v473
    %v658 = vpack.c.b16 %v478, %v474
    %v659 = vpack.c.b16 %v483, %v479
    %v660 = vpack.c.b16 %v484, %v480
    %v661 = vpack.c.b16 %v485, %v481
    %v662 = vpack.c.b16 %v486, %v482
    %v663 = vpack.c.b16 %v491, %v487
    %v664 = vpack.c.b16 %v492, %v488
    %v665 = vpack.c.b16 %v493, %v489
    %v666 = vpack.c.b16 %v494, %v490
    %v667 = vpack.c.b16 %v499, %v495
    %v668 = vpack.c.b16 %v500, %v496
    %v669 = vpack.c.b16 %v501, %v497
    %v670 = vpack.c.b16 %v502, %v498
    %v671 = vpack.c.b16 %v507, %v503
    %v672 = vpack.c.b16 %v508, %v504
    %v673 = vpack.c.b16 %v509, %v505
    %v674 = vpack.c.b16 %v510, %v506
    %v675 = vpack.c.b16 %v515, %v511
    %v676 = vpack.c.b16 %v516, %v512
    %v677 = vpack.c.b16 %v517, %v513
    %v678 = vpack.c.b16 %v518, %v514
    %v679 = vpack.c.b16 %v523, %v519
    %v680 = vpack.c.b16 %v524, %v520
    %v681 = vpack.c.b16 %v525, %v521
    %v682 = vpack.c.b16 %v526, %v522
    %v683 = vpack.c.b16 %v531, %v527
    %v684 = vpack.c.b16 %v532, %v528
    %v685 = vpack.c.b16 %v533, %v529
    %v686 = vpack.c.b16 %v534, %v530
    %v687 = vpack.c.b16 %v539, %v535
    %v688 = vpack.c.b16 %v540, %v536
    %v689 = vpack.c.b16 %v541, %v537
    %v690 = vpack.c.b16 %v542, %v538
    %v691 = vpack.c.b16 %v547, %v543
    %v692 = vpack.c.b16 %v548, %v544
    %v693 = vpack.c.b16 %v549, %v545
    %v694 = vpack.c.b16 %v550, %v546
    %v695 = vpack.c.b16 %v555, %v551
    %v696 = vpack.c.b16 %v556, %v552
    %v697 = vpack.c.b16 %v557, %v553
    %v698 = vpack.c.b16 %v558, %v554
    %v699 = vpack.c.b16 %v563, %v559
    %v700 = vpack.c.b16 %v564, %v560
    %v701 = vpack.c.b16 %v565, %v561
    %v702 = vpack.c.b16 %v566, %v562
    %v703 = vpack.c.b16 %v571, %v567
    %v704 = vpack.c.b16 %v572, %v568
    %v705 = vpack.c.b16 %v573, %v569
    %v706 = vpack.c.b16 %v574, %v570
    %v707 = vpack.c.b16 %v579, %v575
    %v708 = vpack.c.b16 %v580, %v576
    %v709 = vpack.c.b16 %v581, %v577
    %v710 = vpack.c.b16 %v582, %v578
    %839 = vmatprep.subr.bf16.mxu0 %v584
    %840 = vmatpush1.bf16.msra.mxu0 %v583
    %841 = vmatprep.subr.bf16.mxu0 %v588
    %842 = vmatpush1.bf16.msra.mxu0 %v587
    %843 = vmatprep.subr.bf16.mxu0 %v592
    %844 = vmatpush1.bf16.msra.mxu0 %v591
    %845 = vmatprep.subr.bf16.mxu0 %v596
    %846 = vmatpush1.bf16.msra.mxu0 %v595
    %847 = vmatprep.subr.bf16.mxu0 %v600
    %848 = vmatpush1.bf16.msra.mxu0 %v599
    %849 = vmatprep.subr.bf16.mxu0 %v604
    %850 = vmatpush1.bf16.msra.mxu0 %v603
    %851 = vmatprep.subr.bf16.mxu0 %v608
    %852 = vmatpush1.bf16.msra.mxu0 %v607
    %853 = vmatprep.subr.bf16.mxu0 %v612
    %854 = vmatpush1.bf16.msra.mxu0 %v611
    %855 = vmatprep.subr.bf16.mxu0 %v616
    %856 = vmatpush1.bf16.msra.mxu0 %v615
    %857 = vmatprep.subr.bf16.mxu0 %v620
    %858 = vmatpush1.bf16.msra.mxu0 %v619
    %859 = vmatprep.subr.bf16.mxu0 %v624
    %860 = vmatpush1.bf16.msra.mxu0 %v623
    %861 = vmatprep.subr.bf16.mxu0 %v628
    %862 = vmatpush1.bf16.msra.mxu0 %v627
    %863 = vmatprep.subr.bf16.mxu0 %v632
    %864 = vmatpush1.bf16.msra.mxu0 %v631
    %865 = vmatprep.subr.bf16.mxu0 %v636
    %866 = vmatpush1.bf16.msra.mxu0 %v635
    %867 = vmatprep.subr.bf16.mxu0 %v640
    %868 = vmatpush1.bf16.msra.mxu0 %v639
    %869 = vmatprep.subr.bf16.mxu0 %v644
    %870 = vmatpush1.bf16.msra.mxu0 %v643
    %871 = vmatprep.mubr.bf16.mxu0 %v46
    %872 = vmatmul.mubr.bf16.gmra.mrb[0].mxu0 %v45
    %v873 = vpop.f32.mrb[0].mxu0
    %v874 = vadd.f32 %v182, %v873
    %v875 = vpop.f32.mrb[0].mxu0
    %v876 = vadd.f32 %v186, %v875
    %v877 = vpop.f32.mrb[0].mxu0
    %v878 = vpop.f32.mrb[0].mxu0
    %879 = vdwg.mxu0
    %880 = vmatprep.subr.bf16.mxu0 %v648
    %881 = vmatpush1.bf16.msra.mxu0 %v647
    %882 = vmatprep.subr.bf16.mxu0 %v652
    %883 = vmatpush1.bf16.msra.mxu0 %v651
    %884 = vmatprep.subr.bf16.mxu0 %v656
    %885 = vmatpush1.bf16.msra.mxu0 %v655
    %886 = vmatprep.subr.bf16.mxu0 %v660
    %887 = vmatpush1.bf16.msra.mxu0 %v659
    %888 = vmatprep.subr.bf16.mxu0 %v664
    %889 = vmatpush1.bf16.msra.mxu0 %v663
    %890 = vmatprep.subr.bf16.mxu0 %v668
    %891 = vmatpush1.bf16.msra.mxu0 %v667
    %892 = vmatprep.subr.bf16.mxu0 %v672
    %893 = vmatpush1.bf16.msra.mxu0 %v671
    %894 = vmatprep.subr.bf16.mxu0 %v676
    %895 = vmatpush1.bf16.msra.mxu0 %v675
    %896 = vmatprep.subr.bf16.mxu0 %v680
    %897 = vmatpush1.bf16.msra.mxu0 %v679
    %898 = vmatprep.subr.bf16.mxu0 %v684
    %899 = vmatpush1.bf16.msra.mxu0 %v683
    %900 = vmatprep.subr.bf16.mxu0 %v688
    %901 = vmatpush1.bf16.msra.mxu0 %v687
    %902 = vmatprep.subr.bf16.mxu0 %v692
    %903 = vmatpush1.bf16.msra.mxu0 %v691
    %904 = vmatprep.subr.bf16.mxu0 %v696
    %905 = vmatpush1.bf16.msra.mxu0 %v695
    %906 = vmatprep.subr.bf16.mxu0 %v700
    %907 = vmatpush1.bf16.msra.mxu0 %v699
    %908 = vmatprep.subr.bf16.mxu0 %v704
    %909 = vmatpush1.bf16.msra.mxu0 %v703
    %910 = vmatprep.subr.bf16.mxu0 %v708
    %911 = vmatpush1.bf16.msra.mxu0 %v707
    %912 = vmatprep.mubr.bf16.mxu0 %v48
    %913 = vmatmul.mubr.bf16.gmra.mrb[0].mxu0 %v47
    %v914 = vpop.f32.mrb[0].mxu0
    %v915 = vadd.f32 %v874, %v914
    %v916 = vpop.f32.mrb[0].mxu0
    %v917 = vadd.f32 %v876, %v916
    %v918 = vpop.f32.mrb[0].mxu0
    %v919 = vpop.f32.mrb[0].mxu0
    %920 = vdwg.mxu0
    %921 = vmatprep.subr.bf16.mxu0 %v586
    %922 = vmatpush1.bf16.msra.mxu0 %v585
    %923 = vmatprep.subr.bf16.mxu0 %v590
    %924 = vmatpush1.bf16.msra.mxu0 %v589
    %925 = vmatprep.subr.bf16.mxu0 %v594
    %926 = vmatpush1.bf16.msra.mxu0 %v593
    %927 = vmatprep.subr.bf16.mxu0 %v598
    %928 = vmatpush1.bf16.msra.mxu0 %v597
    %929 = vmatprep.subr.bf16.mxu0 %v602
    %930 = vmatpush1.bf16.msra.mxu0 %v601
    %931 = vmatprep.subr.bf16.mxu0 %v606
    %932 = vmatpush1.bf16.msra.mxu0 %v605
    %933 = vmatprep.subr.bf16.mxu0 %v610
    %934 = vmatpush1.bf16.msra.mxu0 %v609
    %935 = vmatprep.subr.bf16.mxu0 %v614
    %936 = vmatpush1.bf16.msra.mxu0 %v613
    %937 = vmatprep.subr.bf16.mxu0 %v618
    %938 = vmatpush1.bf16.msra.mxu0 %v617
    %939 = vmatprep.subr.bf16.mxu0 %v622
    %940 = vmatpush1.bf16.msra.mxu0 %v621
    %941 = vmatprep.subr.bf16.mxu0 %v626
    %942 = vmatpush1.bf16.msra.mxu0 %v625
    %943 = vmatprep.subr.bf16.mxu0 %v630
    %944 = vmatpush1.bf16.msra.mxu0 %v629
    %945 = vmatprep.subr.bf16.mxu0 %v634
    %946 = vmatpush1.bf16.msra.mxu0 %v633
    %947 = vmatprep.subr.bf16.mxu0 %v638
    %948 = vmatpush1.bf16.msra.mxu0 %v637
    %949 = vmatprep.subr.bf16.mxu0 %v642
    %950 = vmatpush1.bf16.msra.mxu0 %v641
    %951 = vmatprep.subr.bf16.mxu0 %v646
    %952 = vmatpush1.bf16.msra.mxu0 %v645
    %953 = vmatprep.mubr.bf16.mxu0 %v46
    %954 = vmatmul.mubr.bf16.gmra.mrb[0].mxu0 %v45
    %v955 = vpop.f32.mrb[0].mxu0
    %v956 = vadd.f32 %v190, %v955
    %v957 = vpop.f32.mrb[0].mxu0
    %v958 = vadd.f32 %v194, %v957
    %v959 = vpop.f32.mrb[0].mxu0
    %v960 = vpop.f32.mrb[0].mxu0
    %961 = vdwg.mxu0
    %962 = vmatprep.subr.bf16.mxu0 %v650
    %963 = vmatpush1.bf16.msra.mxu0 %v649
    %964 = vmatprep.subr.bf16.mxu0 %v654
    %965 = vmatpush1.bf16.msra.mxu0 %v653
    %966 = vmatprep.subr.bf16.mxu0 %v658
    %967 = vmatpush1.bf16.msra.mxu0 %v657
    %968 = vmatprep.subr.bf16.mxu0 %v662
    %969 = vmatpush1.bf16.msra.mxu0 %v661
    %970 = vmatprep.subr.bf16.mxu0 %v666
    %971 = vmatpush1.bf16.msra.mxu0 %v665
    %972 = vmatprep.subr.bf16.mxu0 %v670
    %973 = vmatpush1.bf16.msra.mxu0 %v669
    %974 = vmatprep.subr.bf16.mxu0 %v674
    %975 = vmatpush1.bf16.msra.mxu0 %v673
    %976 = vmatprep.subr.bf16.mxu0 %v678
    %977 = vmatpush1.bf16.msra.mxu0 %v677
    %978 = vmatprep.subr.bf16.mxu0 %v682
    %979 = vmatpush1.bf16.msra.mxu0 %v681
    %980 = vmatprep.subr.bf16.mxu0 %v686
    %981 = vmatpush1.bf16.msra.mxu0 %v685
    %982 = vmatprep.subr.bf16.mxu0 %v690
    %983 = vmatpush1.bf16.msra.mxu0 %v689
    %984 = vmatprep.subr.bf16.mxu0 %v694
    %985 = vmatpush1.bf16.msra.mxu0 %v693
    %986 = vmatprep.subr.bf16.mxu0 %v698
    %987 = vmatpush1.bf16.msra.mxu0 %v697
    %988 = vmatprep.subr.bf16.mxu0 %v702
    %989 = vmatpush1.bf16.msra.mxu0 %v701
    %990 = vmatprep.subr.bf16.mxu0 %v706
    %991 = vmatpush1.bf16.msra.mxu0 %v705
    %992 = vmatprep.subr.bf16.mxu0 %v710
    %993 = vmatpush1.bf16.msra.mxu0 %v709
    %994 = vmatprep.mubr.bf16.mxu0 %v48
    %995 = vmatmul.mubr.bf16.gmra.mrb[0].mxu0 %v47
    %v996 = vpop.f32.mrb[0].mxu0
    %v997 = vadd.f32 %v956, %v996
    %v998 = vpop.f32.mrb[0].mxu0
    %v999 = vadd.f32 %v958, %v998
    %v1000 = vpop.f32.mrb[0].mxu0
    %v1001 = vpop.f32.mrb[0].mxu0
    %1002 = vdwg.mxu0
    %1003 = vst [vmem:[#allocation7] sm:$0xff] %v915
    %1004 = vst [vmem:[#allocation7 + $0x8] sm:$0xff] %v917
    %1005 = vst [vmem:[#allocation7 + $0x10] sm:$0xff] %v997
    %1006 = vst [vmem:[#allocation7 + $0x18] sm:$0xff] %v999
    // Predicated region
    $region22: #{tpu_custom_call.1} parent=1 // pred_check
      _
    $region23: #{tpu_custom_call.1} parent=1 // pred_check_branch
      %1008 = sbr.rel (0) target = $region25
    $region24: #{tpu_custom_call.1} parent=1 // pred_region
      %s1010 = ssub.s32 512, 512
      %1011 = vsyncadd [#allocation4], %s1010
      %s1013 = sshll.u32 [#allocation7], 4
      %s1014 = int_to_ptr.vmem [resolvable:$true] %s1013
      %1016 = dma.vmem_to_hbm [thread:$0]  %s1014, 512, %s3, [#allocation4]
    $region25: #{tpu_custom_call.1} parent=1 // pred_fallthru
      _
    // Predicated region
    $region26: #{tpu_custom_call.1} parent=1 // pred_check
      _
    $region27: #{tpu_custom_call.1} parent=1 // pred_check_branch
      %1018 = sbr.rel (0) target = $region29
    $region28: #{tpu_custom_call.1} parent=1 // pred_region
      %1019 = dma.done [#allocation4], 512
    $region29: #{tpu_custom_call.1} parent=1 // pred_fallthru
      _
    %1020 = vsyncpa [#allocation3], 1
    %1021 = vsyncpa [#allocation6], 1
    %1022 = vsyncpa [#allocation4], 1

</llo_original>
